<compile_context>
chip_gen: v6e
topology: v6e:2x2x1
jax: 0.10.0
libtpu: 0.0.40
codegen_flags: <defaults>
</compile_context>

<pallas_src>
import functools

import jax
import jax.numpy as jnp
from jax.experimental import pallas as pl
from jax.experimental.pallas import tpu as pltpu


# ----------------------------- Pallas kernel --------------------------------
def mnist_adder_kernel(
    x_ref,                                              # (1, TB*M, F)
    w1, b1, w2, b2, w3, b3, w4, b4, w5, b5, w6, b6,     # feature_extractor
    beta, inv_bias,                                     # InvLinear (sum reduction)
    w7, b7, w8, b8, w9, b9, w10t, b10,                  # output_layer (w10 pre-transposed)
    o_ref,                                              # (1, 1, TB) lane-major output row
    *, tb, m,
):
    def lin(h, w_ref, b_ref):
        return jnp.dot(h, w_ref[...], preferred_element_type=jnp.float32) + b_ref[...]

    def lin_relu(h, w_ref, b_ref):
        return jnp.maximum(lin(h, w_ref, b_ref), 0.0)

    # ---- feature extractor: 6 x (Linear + ReLU); Dropout == identity (eval) ----
    h = x_ref[0]                                   # (TB*M, F)
    h = lin_relu(h, w1, b1)                        # (TB*M, h1)
    h = lin_relu(h, w2, b2)                        # (TB*M, h1)
    h = lin_relu(h, w3, b3)                        # (TB*M, h2)
    h = lin_relu(h, w4, b4)                        # (TB*M, h2)
    h = lin_relu(h, w5, b5)                        # (TB*M, h2)
    h = lin_relu(h, w6, b6)                        # (TB*M, h2)

    # ---- InvLinear (reduction='sum', mask=None): per-set sum over M elements ----
    h2 = h.shape[-1]
    s = jnp.sum(h.reshape(tb, m, h2), axis=1)      # (TB, h2)  -- XLU sublane reduce
    y = jnp.dot(s, beta[...], preferred_element_type=jnp.float32) + inv_bias[...]

    # ---- output layer: ReLU, 3 x (Linear+ReLU), Linear(h2->1), Sigmoid ----
    y = jnp.maximum(y, 0.0)
    y = lin_relu(y, w7, b7)
    y = lin_relu(y, w8, b8)
    y = lin_relu(y, w9, b9)                        # (TB, h2)

    # Final Linear(h2 -> 1) computed transposed so the result is lane-major (1, TB).
    z = pl.dot(w10t[...], y, trans_b=True) + b10[...]          # (1, TB)
    o_ref[0] = pl.reciprocal(1.0 + jnp.exp(-z), approx=True)   # sigmoid (EUP recip)


# ------------------------------- Wrapper -------------------------------------
def mnist_adder_forward(X, params, *, tb=None):
    """X: (N, features, arguments) float32.  Returns (N, 1) float32."""
    N, features, arguments = X.shape
    M = arguments
    if tb is None:
        tb = min(N, 128)          # TB*M rows per block -> up to 1024 MXU LHS rows
    nb = pl.cdiv(N, tb)
    n_pad = nb * tb

    # Reproduce `X.reshape(N, arguments, features)` exactly (reshape, NOT transpose),
    # then flatten to rows and pad the set dimension up to a multiple of TB.
    x2d = X.reshape(N * M, features).astype(jnp.float32)
    if n_pad != N:
        x2d = jnp.pad(x2d, ((0, (n_pad - N) * M), (0, 0)))
    x3d = x2d.reshape(nb, tb * M, features)

    (w1, b1, w2, b2, w3, b3, w4, b4, w5, b5, w6, b6,
     beta, inv_bias, w7, b7, w8, b8, w9, b9, w10, b10) = params
    w10t = jnp.transpose(w10)                      # (1, h2)

    wparams = [w1, b1, w2, b2, w3, b3, w4, b4, w5, b5, w6, b6,
               beta, inv_bias, w7, b7, w8, b8, w9, b9, w10t, b10]

    x_spec = pl.BlockSpec((1, tb * M, features), lambda i: (i, 0, 0))
    # Constant index_map -> weight blocks stay resident in VMEM across grid steps.
    w_specs = [pl.BlockSpec(p.shape, lambda i: (0, 0)) for p in wparams]
    o_spec = pl.BlockSpec((1, 1, tb), lambda i: (i, 0, 0))

    kernel = functools.partial(mnist_adder_kernel, tb=tb, m=M)

    out3 = pl.pallas_call(
        kernel,
        out_shape=jax.ShapeDtypeStruct((nb, 1, tb), jnp.float32),
        grid_spec=pltpu.PrefetchScalarGridSpec(
            num_scalar_prefetch=0,
            grid=(nb,),
            in_specs=[x_spec] + w_specs,
            out_specs=o_spec,
        ),
        compiler_params=pltpu.CompilerParams(
            dimension_semantics=("parallel",)),
    )(x3d, *wparams)

    return out3.reshape(n_pad, 1)[:N]


# ------------------------- Deterministic parameters --------------------------
def make_params(key, input_size, h1, h2):
    """Deterministic synthetic weights, (in, out) layout; biases are (1, out)."""
    shapes = [
        (input_size, h1), (h1,),      # fe Linear 1
        (h1, h1), (h1,),              # fe Linear 2
        (h1, h2), (h2,),              # fe Linear 3
        (h2, h2), (h2,),              # fe Linear 4
        (h2, h2), (h2,),              # fe Linear 5
        (h2, h2), (h2,),              # fe Linear 6
        (h2, h2), (h2,),              # InvLinear beta, bias
        (h2, h2), (h2,),              # out Linear 1
        (h2, h2), (h2,),              # out Linear 2
        (h2, h2), (h2,),              # out Linear 3
        (h2, 1), (1,),                # out Linear 4
    ]
    keys = jax.random.split(key, len(shapes))
    params = []
    for k, s in zip(keys, shapes):
        if len(s) == 2:
            fan_in = s[0]
            params.append(jax.random.normal(k, s, jnp.float32) * (1.0 / jnp.sqrt(fan_in)))
        else:
            params.append(jax.random.normal(k, (1, s[0]), jnp.float32) * 0.01)
    return params


# ------------------------------ Pure-JAX reference ---------------------------
def reference_forward(X, params):
    (w1, b1, w2, b2, w3, b3, w4, b4, w5, b5, w6, b6,
     beta, inv_bias, w7, b7, w8, b8, w9, b9, w10, b10) = params
    N, features, arguments = X.shape
    h = X.reshape(N, arguments, features)
    for w, b in [(w1, b1), (w2, b2), (w3, b3), (w4, b4), (w5, b5), (w6, b6)]:
        h = jnp.maximum(h @ w + b, 0.0)
    s = h.sum(axis=1)                               # InvLinear 'sum', mask=None
    y = s @ beta + inv_bias
    y = jnp.maximum(y, 0.0)
    for w, b in [(w7, b7), (w8, b8), (w9, b9)]:
        y = jnp.maximum(y @ w + b, 0.0)
    y = y @ w10 + b10
    return jax.nn.sigmoid(y)


# --------------------------------- Main ---------------------------------------
if __name__ == "__main__":
    # Small shapes consistent with the module:  X: (N, features=input_size, arguments=M)
    N, input_size, M = 16, 32, 8
    hidden1, hidden2 = 64, 32
    TB = 8                                     # 2 grid steps -> exercises the pipeline

    key = jax.random.PRNGKey(0)
    kx, kp = jax.random.split(key)
    X = jax.random.normal(kx, (N, input_size, M), jnp.float32)
    params = make_params(kp, input_size, hidden1, hidden2)

    out = mnist_adder_forward(X, params, tb=TB)
    out = jax.block_until_ready(out)

    ref = reference_forward(X, params)
    assert out.shape == (N, 1), out.shape
    # approx reciprocal in the sigmoid -> slightly looser tolerance than exact f32
    assert jnp.allclose(out, ref, atol=2e-3, rtol=2e-3), (out, ref)

    print("KERNEL_OK")
</pallas_src>

<mosaic_0001>
module attributes {stable_mosaic.version = 11 : i64} {
  func.func @mnist_adder_kernel(%arg0: i32, %arg1: memref<1x64x32xf32, #tpu.memory_space<vmem>>, %arg2: memref<32x64xf32, #tpu.memory_space<vmem>>, %arg3: memref<1x64xf32, #tpu.memory_space<vmem>>, %arg4: memref<64x64xf32, #tpu.memory_space<vmem>>, %arg5: memref<1x64xf32, #tpu.memory_space<vmem>>, %arg6: memref<64x32xf32, #tpu.memory_space<vmem>>, %arg7: memref<1x32xf32, #tpu.memory_space<vmem>>, %arg8: memref<32x32xf32, #tpu.memory_space<vmem>>, %arg9: memref<1x32xf32, #tpu.memory_space<vmem>>, %arg10: memref<32x32xf32, #tpu.memory_space<vmem>>, %arg11: memref<1x32xf32, #tpu.memory_space<vmem>>, %arg12: memref<32x32xf32, #tpu.memory_space<vmem>>, %arg13: memref<1x32xf32, #tpu.memory_space<vmem>>, %arg14: memref<32x32xf32, #tpu.memory_space<vmem>>, %arg15: memref<1x32xf32, #tpu.memory_space<vmem>>, %arg16: memref<32x32xf32, #tpu.memory_space<vmem>>, %arg17: memref<1x32xf32, #tpu.memory_space<vmem>>, %arg18: memref<32x32xf32, #tpu.memory_space<vmem>>, %arg19: memref<1x32xf32, #tpu.memory_space<vmem>>, %arg20: memref<32x32xf32, #tpu.memory_space<vmem>>, %arg21: memref<1x32xf32, #tpu.memory_space<vmem>>, %arg22: memref<1x32xf32, #tpu.memory_space<vmem>>, %arg23: memref<1x1xf32, #tpu.memory_space<vmem>>, %arg24: memref<1x1x8xf32, #tpu.memory_space<vmem>>) attributes {dimension_semantics = [#tpu.dimension_semantics<parallel>], iteration_bounds = array<i64: 2>, scalar_prefetch = 0 : i64, scratch_operands = 0 : i64, tpu.core_type = #tpu.core_type<tc>, window_params = [{transform_indices = @transform_0, window_bounds = array<i64: 1, 64, 32>}, {pipeline_mode = #tpu.pipeline_mode<synchronous>, transform_indices = @transform_1, window_bounds = array<i64: 32, 64>}, {pipeline_mode = #tpu.pipeline_mode<synchronous>, transform_indices = @transform_2, window_bounds = array<i64: 1, 64>}, {pipeline_mode = #tpu.pipeline_mode<synchronous>, transform_indices = @transform_3, window_bounds = array<i64: 64, 64>}, {pipeline_mode = #tpu.pipeline_mode<synchronous>, transform_indices = @transform_4, window_bounds = array<i64: 1, 64>}, {pipeline_mode = #tpu.pipeline_mode<synchronous>, transform_indices = @transform_5, window_bounds = array<i64: 64, 32>}, {pipeline_mode = #tpu.pipeline_mode<synchronous>, transform_indices = @transform_6, window_bounds = array<i64: 1, 32>}, {pipeline_mode = #tpu.pipeline_mode<synchronous>, transform_indices = @transform_7, window_bounds = array<i64: 32, 32>}, {pipeline_mode = #tpu.pipeline_mode<synchronous>, transform_indices = @transform_8, window_bounds = array<i64: 1, 32>}, {pipeline_mode = #tpu.pipeline_mode<synchronous>, transform_indices = @transform_9, window_bounds = array<i64: 32, 32>}, {pipeline_mode = #tpu.pipeline_mode<synchronous>, transform_indices = @transform_10, window_bounds = array<i64: 1, 32>}, {pipeline_mode = #tpu.pipeline_mode<synchronous>, transform_indices = @transform_11, window_bounds = array<i64: 32, 32>}, {pipeline_mode = #tpu.pipeline_mode<synchronous>, transform_indices = @transform_12, window_bounds = array<i64: 1, 32>}, {pipeline_mode = #tpu.pipeline_mode<synchronous>, transform_indices = @transform_13, window_bounds = array<i64: 32, 32>}, {pipeline_mode = #tpu.pipeline_mode<synchronous>, transform_indices = @transform_14, window_bounds = array<i64: 1, 32>}, {pipeline_mode = #tpu.pipeline_mode<synchronous>, transform_indices = @transform_15, window_bounds = array<i64: 32, 32>}, {pipeline_mode = #tpu.pipeline_mode<synchronous>, transform_indices = @transform_16, window_bounds = array<i64: 1, 32>}, {pipeline_mode = #tpu.pipeline_mode<synchronous>, transform_indices = @transform_17, window_bounds = array<i64: 32, 32>}, {pipeline_mode = #tpu.pipeline_mode<synchronous>, transform_indices = @transform_18, window_bounds = array<i64: 1, 32>}, {pipeline_mode = #tpu.pipeline_mode<synchronous>, transform_indices = @transform_19, window_bounds = array<i64: 32, 32>}, {pipeline_mode = #tpu.pipeline_mode<synchronous>, transform_indices = @transform_20, window_bounds = array<i64: 1, 32>}, {pipeline_mode = #tpu.pipeline_mode<synchronous>, transform_indices = @transform_21, window_bounds = array<i64: 1, 32>}, {pipeline_mode = #tpu.pipeline_mode<synchronous>, transform_indices = @transform_22, window_bounds = array<i64: 1, 1>}, {transform_indices = @transform_23, window_bounds = array<i64: 1, 1, 8>}]} {
    %c0 = arith.constant 0 : index
    %c0_0 = arith.constant 0 : index
    %c0_1 = arith.constant 0 : index
    %0 = vector.load %arg1[%c0, %c0_0, %c0_1] : memref<1x64x32xf32, #tpu.memory_space<vmem>>, vector<1x64x32xf32>
    %1 = vector.shape_cast %0 : vector<1x64x32xf32> to vector<64x32xf32>
    %c0_2 = arith.constant 0 : index
    %c0_3 = arith.constant 0 : index
    %2 = vector.load %arg2[%c0_2, %c0_3] : memref<32x64xf32, #tpu.memory_space<vmem>>, vector<32x64xf32>
    %cst = arith.constant dense<0.000000e+00> : vector<64x64xf32>
    %3 = tpu.matmul %1, %2, %cst {dimension_numbers = #tpu.dot_dimension_numbers<[1], [0], [0], [1], [0, 0, 1, 1], [], []>} : vector<64x32xf32>, vector<32x64xf32>, vector<64x64xf32> -> vector<64x64xf32>
    %c0_4 = arith.constant 0 : index
    %c0_5 = arith.constant 0 : index
    %4 = vector.load %arg3[%c0_4, %c0_5] : memref<1x64xf32, #tpu.memory_space<vmem>>, vector<1x64xf32>
    %5 = vector.broadcast %4 : vector<1x64xf32> to vector<64x64xf32>
    %6 = arith.addf %3, %5 : vector<64x64xf32>
    %cst_6 = arith.constant 0.000000e+00 : f32
    %7 = vector.broadcast %cst_6 : f32 to vector<64x64xf32>
    %8 = arith.maximumf %6, %7 : vector<64x64xf32>
    %c0_7 = arith.constant 0 : index
    %c0_8 = arith.constant 0 : index
    %9 = vector.load %arg4[%c0_7, %c0_8] : memref<64x64xf32, #tpu.memory_space<vmem>>, vector<64x64xf32>
    %cst_9 = arith.constant dense<0.000000e+00> : vector<64x64xf32>
    %10 = tpu.matmul %8, %9, %cst_9 {dimension_numbers = #tpu.dot_dimension_numbers<[1], [0], [0], [1], [0, 0, 1, 1], [], []>} : vector<64x64xf32>, vector<64x64xf32>, vector<64x64xf32> -> vector<64x64xf32>
    %c0_10 = arith.constant 0 : index
    %c0_11 = arith.constant 0 : index
    %11 = vector.load %arg5[%c0_10, %c0_11] : memref<1x64xf32, #tpu.memory_space<vmem>>, vector<1x64xf32>
    %12 = vector.broadcast %11 : vector<1x64xf32> to vector<64x64xf32>
    %13 = arith.addf %10, %12 : vector<64x64xf32>
    %cst_12 = arith.constant 0.000000e+00 : f32
    %14 = vector.broadcast %cst_12 : f32 to vector<64x64xf32>
    %15 = arith.maximumf %13, %14 : vector<64x64xf32>
    %c0_13 = arith.constant 0 : index
    %c0_14 = arith.constant 0 : index
    %16 = vector.load %arg6[%c0_13, %c0_14] : memref<64x32xf32, #tpu.memory_space<vmem>>, vector<64x32xf32>
    %cst_15 = arith.constant dense<0.000000e+00> : vector<64x32xf32>
    %17 = tpu.matmul %15, %16, %cst_15 {dimension_numbers = #tpu.dot_dimension_numbers<[1], [0], [0], [1], [0, 0, 1, 1], [], []>} : vector<64x64xf32>, vector<64x32xf32>, vector<64x32xf32> -> vector<64x32xf32>
    %c0_16 = arith.constant 0 : index
    %c0_17 = arith.constant 0 : index
    %18 = vector.load %arg7[%c0_16, %c0_17] : memref<1x32xf32, #tpu.memory_space<vmem>>, vector<1x32xf32>
    %19 = vector.broadcast %18 : vector<1x32xf32> to vector<64x32xf32>
    %20 = arith.addf %17, %19 : vector<64x32xf32>
    %cst_18 = arith.constant 0.000000e+00 : f32
    %21 = vector.broadcast %cst_18 : f32 to vector<64x32xf32>
    %22 = arith.maximumf %20, %21 : vector<64x32xf32>
    %c0_19 = arith.constant 0 : index
    %c0_20 = arith.constant 0 : index
    %23 = vector.load %arg8[%c0_19, %c0_20] : memref<32x32xf32, #tpu.memory_space<vmem>>, vector<32x32xf32>
    %cst_21 = arith.constant dense<0.000000e+00> : vector<64x32xf32>
    %24 = tpu.matmul %22, %23, %cst_21 {dimension_numbers = #tpu.dot_dimension_numbers<[1], [0], [0], [1], [0, 0, 1, 1], [], []>} : vector<64x32xf32>, vector<32x32xf32>, vector<64x32xf32> -> vector<64x32xf32>
    %c0_22 = arith.constant 0 : index
    %c0_23 = arith.constant 0 : index
    %25 = vector.load %arg9[%c0_22, %c0_23] : memref<1x32xf32, #tpu.memory_space<vmem>>, vector<1x32xf32>
    %26 = vector.broadcast %25 : vector<1x32xf32> to vector<64x32xf32>
    %27 = arith.addf %24, %26 : vector<64x32xf32>
    %cst_24 = arith.constant 0.000000e+00 : f32
    %28 = vector.broadcast %cst_24 : f32 to vector<64x32xf32>
    %29 = arith.maximumf %27, %28 : vector<64x32xf32>
    %c0_25 = arith.constant 0 : index
    %c0_26 = arith.constant 0 : index
    %30 = vector.load %arg10[%c0_25, %c0_26] : memref<32x32xf32, #tpu.memory_space<vmem>>, vector<32x32xf32>
    %cst_27 = arith.constant dense<0.000000e+00> : vector<64x32xf32>
    %31 = tpu.matmul %29, %30, %cst_27 {dimension_numbers = #tpu.dot_dimension_numbers<[1], [0], [0], [1], [0, 0, 1, 1], [], []>} : vector<64x32xf32>, vector<32x32xf32>, vector<64x32xf32> -> vector<64x32xf32>
    %c0_28 = arith.constant 0 : index
    %c0_29 = arith.constant 0 : index
    %32 = vector.load %arg11[%c0_28, %c0_29] : memref<1x32xf32, #tpu.memory_space<vmem>>, vector<1x32xf32>
    %33 = vector.broadcast %32 : vector<1x32xf32> to vector<64x32xf32>
    %34 = arith.addf %31, %33 : vector<64x32xf32>
    %cst_30 = arith.constant 0.000000e+00 : f32
    %35 = vector.broadcast %cst_30 : f32 to vector<64x32xf32>
    %36 = arith.maximumf %34, %35 : vector<64x32xf32>
    %c0_31 = arith.constant 0 : index
    %c0_32 = arith.constant 0 : index
    %37 = vector.load %arg12[%c0_31, %c0_32] : memref<32x32xf32, #tpu.memory_space<vmem>>, vector<32x32xf32>
    %cst_33 = arith.constant dense<0.000000e+00> : vector<64x32xf32>
    %38 = tpu.matmul %36, %37, %cst_33 {dimension_numbers = #tpu.dot_dimension_numbers<[1], [0], [0], [1], [0, 0, 1, 1], [], []>} : vector<64x32xf32>, vector<32x32xf32>, vector<64x32xf32> -> vector<64x32xf32>
    %c0_34 = arith.constant 0 : index
    %c0_35 = arith.constant 0 : index
    %39 = vector.load %arg13[%c0_34, %c0_35] : memref<1x32xf32, #tpu.memory_space<vmem>>, vector<1x32xf32>
    %40 = vector.broadcast %39 : vector<1x32xf32> to vector<64x32xf32>
    %41 = arith.addf %38, %40 : vector<64x32xf32>
    %cst_36 = arith.constant 0.000000e+00 : f32
    %42 = vector.broadcast %cst_36 : f32 to vector<64x32xf32>
    %43 = arith.maximumf %41, %42 : vector<64x32xf32>
    %44 = vector.shape_cast %43 : vector<64x32xf32> to vector<8x8x32xf32>
    %cst_37 = arith.constant dense<0.000000e+00> : vector<8x32xf32>
    %45 = vector.multi_reduction <add>, %44, %cst_37 [1] : vector<8x8x32xf32> to vector<8x32xf32>
    %c0_38 = arith.constant 0 : index
    %c0_39 = arith.constant 0 : index
    %46 = vector.load %arg14[%c0_38, %c0_39] : memref<32x32xf32, #tpu.memory_space<vmem>>, vector<32x32xf32>
    %cst_40 = arith.constant dense<0.000000e+00> : vector<8x32xf32>
    %47 = tpu.matmul %45, %46, %cst_40 {dimension_numbers = #tpu.dot_dimension_numbers<[1], [0], [0], [1], [0, 0, 1, 1], [], []>} : vector<8x32xf32>, vector<32x32xf32>, vector<8x32xf32> -> vector<8x32xf32>
    %c0_41 = arith.constant 0 : index
    %c0_42 = arith.constant 0 : index
    %48 = vector.load %arg15[%c0_41, %c0_42] : memref<1x32xf32, #tpu.memory_space<vmem>>, vector<1x32xf32>
    %49 = vector.broadcast %48 : vector<1x32xf32> to vector<8x32xf32>
    %50 = arith.addf %47, %49 : vector<8x32xf32>
    %cst_43 = arith.constant 0.000000e+00 : f32
    %51 = vector.broadcast %cst_43 : f32 to vector<8x32xf32>
    %52 = arith.maximumf %50, %51 : vector<8x32xf32>
    %c0_44 = arith.constant 0 : index
    %c0_45 = arith.constant 0 : index
    %53 = vector.load %arg16[%c0_44, %c0_45] : memref<32x32xf32, #tpu.memory_space<vmem>>, vector<32x32xf32>
    %cst_46 = arith.constant dense<0.000000e+00> : vector<8x32xf32>
    %54 = tpu.matmul %52, %53, %cst_46 {dimension_numbers = #tpu.dot_dimension_numbers<[1], [0], [0], [1], [0, 0, 1, 1], [], []>} : vector<8x32xf32>, vector<32x32xf32>, vector<8x32xf32> -> vector<8x32xf32>
    %c0_47 = arith.constant 0 : index
    %c0_48 = arith.constant 0 : index
    %55 = vector.load %arg17[%c0_47, %c0_48] : memref<1x32xf32, #tpu.memory_space<vmem>>, vector<1x32xf32>
    %56 = vector.broadcast %55 : vector<1x32xf32> to vector<8x32xf32>
    %57 = arith.addf %54, %56 : vector<8x32xf32>
    %cst_49 = arith.constant 0.000000e+00 : f32
    %58 = vector.broadcast %cst_49 : f32 to vector<8x32xf32>
    %59 = arith.maximumf %57, %58 : vector<8x32xf32>
    %c0_50 = arith.constant 0 : index
    %c0_51 = arith.constant 0 : index
    %60 = vector.load %arg18[%c0_50, %c0_51] : memref<32x32xf32, #tpu.memory_space<vmem>>, vector<32x32xf32>
    %cst_52 = arith.constant dense<0.000000e+00> : vector<8x32xf32>
    %61 = tpu.matmul %59, %60, %cst_52 {dimension_numbers = #tpu.dot_dimension_numbers<[1], [0], [0], [1], [0, 0, 1, 1], [], []>} : vector<8x32xf32>, vector<32x32xf32>, vector<8x32xf32> -> vector<8x32xf32>
    %c0_53 = arith.constant 0 : index
    %c0_54 = arith.constant 0 : index
    %62 = vector.load %arg19[%c0_53, %c0_54] : memref<1x32xf32, #tpu.memory_space<vmem>>, vector<1x32xf32>
    %63 = vector.broadcast %62 : vector<1x32xf32> to vector<8x32xf32>
    %64 = arith.addf %61, %63 : vector<8x32xf32>
    %cst_55 = arith.constant 0.000000e+00 : f32
    %65 = vector.broadcast %cst_55 : f32 to vector<8x32xf32>
    %66 = arith.maximumf %64, %65 : vector<8x32xf32>
    %c0_56 = arith.constant 0 : index
    %c0_57 = arith.constant 0 : index
    %67 = vector.load %arg20[%c0_56, %c0_57] : memref<32x32xf32, #tpu.memory_space<vmem>>, vector<32x32xf32>
    %cst_58 = arith.constant dense<0.000000e+00> : vector<8x32xf32>
    %68 = tpu.matmul %66, %67, %cst_58 {dimension_numbers = #tpu.dot_dimension_numbers<[1], [0], [0], [1], [0, 0, 1, 1], [], []>} : vector<8x32xf32>, vector<32x32xf32>, vector<8x32xf32> -> vector<8x32xf32>
    %c0_59 = arith.constant 0 : index
    %c0_60 = arith.constant 0 : index
    %69 = vector.load %arg21[%c0_59, %c0_60] : memref<1x32xf32, #tpu.memory_space<vmem>>, vector<1x32xf32>
    %70 = vector.broadcast %69 : vector<1x32xf32> to vector<8x32xf32>
    %71 = arith.addf %68, %70 : vector<8x32xf32>
    %cst_61 = arith.constant 0.000000e+00 : f32
    %72 = vector.broadcast %cst_61 : f32 to vector<8x32xf32>
    %73 = arith.maximumf %71, %72 : vector<8x32xf32>
    %c0_62 = arith.constant 0 : index
    %c0_63 = arith.constant 0 : index
    %74 = vector.load %arg22[%c0_62, %c0_63] : memref<1x32xf32, #tpu.memory_space<vmem>>, vector<1x32xf32>
    %cst_64 = arith.constant dense<0.000000e+00> : vector<1x8xf32>
    %75 = tpu.matmul %74, %73, %cst_64 {dimension_numbers = #tpu.dot_dimension_numbers<[1], [1], [0], [0], [0, 0, 1, 0], [], []>} : vector<1x32xf32>, vector<8x32xf32>, vector<1x8xf32> -> vector<1x8xf32>
    %c0_65 = arith.constant 0 : index
    %c0_66 = arith.constant 0 : index
    %76 = vector.load %arg23[%c0_65, %c0_66] : memref<1x1xf32, #tpu.memory_space<vmem>>, vector<1x1xf32>
    %77 = vector.broadcast %76 : vector<1x1xf32> to vector<1x8xf32>
    %78 = arith.addf %75, %77 : vector<1x8xf32>
    %cst_67 = arith.constant 0.000000e+00 : f32
    %79 = vector.broadcast %cst_67 : f32 to vector<1x8xf32>
    %80 = arith.subf %79, %78 : vector<1x8xf32>
    %81 = math.exp %80 : vector<1x8xf32>
    %cst_68 = arith.constant 1.000000e+00 : f32
    %82 = vector.broadcast %cst_68 : f32 to vector<1x8xf32>
    %83 = arith.addf %82, %81 : vector<1x8xf32>
    %84 = tpu.reciprocal %83 {approx = true} : vector<1x8xf32> -> vector<1x8xf32>
    %c0_69 = arith.constant 0 : index
    %c0_70 = arith.constant 0 : index
    %c0_71 = arith.constant 0 : index
    %85 = vector.load %arg24[%c0_69, %c0_70, %c0_71] : memref<1x1x8xf32, #tpu.memory_space<vmem>>, vector<1x1x8xf32>
    %86 = vector.shape_cast %85 : vector<1x1x8xf32> to vector<1x8xf32>
    %87 = vector.shape_cast %84 : vector<1x8xf32> to vector<1x1x8xf32>
    tpu.vector_store %arg24[%c0_69, %c0_70, %c0_71], %87 {strides = array<i32>} : memref<1x1x8xf32, #tpu.memory_space<vmem>>, vector<1x1x8xf32>,
    return
  }
  func.func @transform_0(%arg0: i32) -> (i32, i32, i32) {
    %c0_i32 = arith.constant 0 : i32
    %c0_i32_0 = arith.constant 0 : i32
    %c0_i32_1 = arith.constant 0 : i32
    return %arg0, %c0_i32, %c0_i32_0 : i32, i32, i32
  }
  func.func @transform_1(%arg0: i32) -> (i32, i32) {
    %c0_i32 = arith.constant 0 : i32
    %c0_i32_0 = arith.constant 0 : i32
    %c0_i32_1 = arith.constant 0 : i32
    return %c0_i32, %c0_i32_0 : i32, i32
  }
  func.func @transform_2(%arg0: i32) -> (i32, i32) {
    %c0_i32 = arith.constant 0 : i32
    %c0_i32_0 = arith.constant 0 : i32
    %c0_i32_1 = arith.constant 0 : i32
    return %c0_i32, %c0_i32_0 : i32, i32
  }
  func.func @transform_3(%arg0: i32) -> (i32, i32) {
    %c0_i32 = arith.constant 0 : i32
    %c0_i32_0 = arith.constant 0 : i32
    %c0_i32_1 = arith.constant 0 : i32
    return %c0_i32, %c0_i32_0 : i32, i32
  }
  func.func @transform_4(%arg0: i32) -> (i32, i32) {
    %c0_i32 = arith.constant 0 : i32
    %c0_i32_0 = arith.constant 0 : i32
    %c0_i32_1 = arith.constant 0 : i32
    return %c0_i32, %c0_i32_0 : i32, i32
  }
  func.func @transform_5(%arg0: i32) -> (i32, i32) {
    %c0_i32 = arith.constant 0 : i32
    %c0_i32_0 = arith.constant 0 : i32
    %c0_i32_1 = arith.constant 0 : i32
    return %c0_i32, %c0_i32_0 : i32, i32
  }
  func.func @transform_6(%arg0: i32) -> (i32, i32) {
    %c0_i32 = arith.constant 0 : i32
    %c0_i32_0 = arith.constant 0 : i32
    %c0_i32_1 = arith.constant 0 : i32
    return %c0_i32, %c0_i32_0 : i32, i32
  }
  func.func @transform_7(%arg0: i32) -> (i32, i32) {
    %c0_i32 = arith.constant 0 : i32
    %c0_i32_0 = arith.constant 0 : i32
    %c0_i32_1 = arith.constant 0 : i32
    return %c0_i32, %c0_i32_0 : i32, i32
  }
  func.func @transform_8(%arg0: i32) -> (i32, i32) {
    %c0_i32 = arith.constant 0 : i32
    %c0_i32_0 = arith.constant 0 : i32
    %c0_i32_1 = arith.constant 0 : i32
    return %c0_i32, %c0_i32_0 : i32, i32
  }
  func.func @transform_9(%arg0: i32) -> (i32, i32) {
    %c0_i32 = arith.constant 0 : i32
    %c0_i32_0 = arith.constant 0 : i32
    %c0_i32_1 = arith.constant 0 : i32
    return %c0_i32, %c0_i32_0 : i32, i32
  }
  func.func @transform_10(%arg0: i32) -> (i32, i32) {
    %c0_i32 = arith.constant 0 : i32
    %c0_i32_0 = arith.constant 0 : i32
    %c0_i32_1 = arith.constant 0 : i32
    return %c0_i32, %c0_i32_0 : i32, i32
  }
  func.func @transform_11(%arg0: i32) -> (i32, i32) {
    %c0_i32 = arith.constant 0 : i32
    %c0_i32_0 = arith.constant 0 : i32
    %c0_i32_1 = arith.constant 0 : i32
    return %c0_i32, %c0_i32_0 : i32, i32
  }
  func.func @transform_12(%arg0: i32) -> (i32, i32) {
    %c0_i32 = arith.constant 0 : i32
    %c0_i32_0 = arith.constant 0 : i32
    %c0_i32_1 = arith.constant 0 : i32
    return %c0_i32, %c0_i32_0 : i32, i32
  }
  func.func @transform_13(%arg0: i32) -> (i32, i32) {
    %c0_i32 = arith.constant 0 : i32
    %c0_i32_0 = arith.constant 0 : i32
    %c0_i32_1 = arith.constant 0 : i32
    return %c0_i32, %c0_i32_0 : i32, i32
  }
  func.func @transform_14(%arg0: i32) -> (i32, i32) {
    %c0_i32 = arith.constant 0 : i32
    %c0_i32_0 = arith.constant 0 : i32
    %c0_i32_1 = arith.constant 0 : i32
    return %c0_i32, %c0_i32_0 : i32, i32
  }
  func.func @transform_15(%arg0: i32) -> (i32, i32) {
    %c0_i32 = arith.constant 0 : i32
    %c0_i32_0 = arith.constant 0 : i32
    %c0_i32_1 = arith.constant 0 : i32
    return %c0_i32, %c0_i32_0 : i32, i32
  }
  func.func @transform_16(%arg0: i32) -> (i32, i32) {
    %c0_i32 = arith.constant 0 : i32
    %c0_i32_0 = arith.constant 0 : i32
    %c0_i32_1 = arith.constant 0 : i32
    return %c0_i32, %c0_i32_0 : i32, i32
  }
  func.func @transform_17(%arg0: i32) -> (i32, i32) {
    %c0_i32 = arith.constant 0 : i32
    %c0_i32_0 = arith.constant 0 : i32
    %c0_i32_1 = arith.constant 0 : i32
    return %c0_i32, %c0_i32_0 : i32, i32
  }
  func.func @transform_18(%arg0: i32) -> (i32, i32) {
    %c0_i32 = arith.constant 0 : i32
    %c0_i32_0 = arith.constant 0 : i32
    %c0_i32_1 = arith.constant 0 : i32
    return %c0_i32, %c0_i32_0 : i32, i32
  }
  func.func @transform_19(%arg0: i32) -> (i32, i32) {
    %c0_i32 = arith.constant 0 : i32
    %c0_i32_0 = arith.constant 0 : i32
    %c0_i32_1 = arith.constant 0 : i32
    return %c0_i32, %c0_i32_0 : i32, i32
  }
  func.func @transform_20(%arg0: i32) -> (i32, i32) {
    %c0_i32 = arith.constant 0 : i32
    %c0_i32_0 = arith.constant 0 : i32
    %c0_i32_1 = arith.constant 0 : i32
    return %c0_i32, %c0_i32_0 : i32, i32
  }
  func.func @transform_21(%arg0: i32) -> (i32, i32) {
    %c0_i32 = arith.constant 0 : i32
    %c0_i32_0 = arith.constant 0 : i32
    %c0_i32_1 = arith.constant 0 : i32
    return %c0_i32, %c0_i32_0 : i32, i32
  }
  func.func @transform_22(%arg0: i32) -> (i32, i32) {
    %c0_i32 = arith.constant 0 : i32
    %c0_i32_0 = arith.constant 0 : i32
    %c0_i32_1 = arith.constant 0 : i32
    return %c0_i32, %c0_i32_0 : i32, i32
  }
  func.func @transform_23(%arg0: i32) -> (i32, i32, i32) {
    %c0_i32 = arith.constant 0 : i32
    %c0_i32_0 = arith.constant 0 : i32
    %c0_i32_1 = arith.constant 0 : i32
    return %arg0, %c0_i32, %c0_i32_0 : i32, i32, i32
  }
}

</mosaic_0001>

<llo_original>
// kernel: tpu_custom_call.1
$region0: #{tpu_custom_call.1}
  #allocation0 [shape = 'u32[]', space=smem, size = 0x4, offset = 0x4, fixed_abs, tag = 'smem constant byte address 0x4 - core index']
  #allocation1 [shape = 'u32[144,128]{1,0:T(1,128)}', space=vmem, size = 0x12000, scoped, tag = 'internal scratch']
  #allocation2 [shape = 'f32[1,1]{1,0:T(1,128)S(1)}', space=vmem, size = 0x200, scoped, tag = 'scoped memory for tpu_custom_call.1']
  %s0 = inlined_call_operand.vmem [shape: f32[2,64,32], index: 0, kind: input, shape index: {}]
  %s1 = inlined_call_operand.vmem [shape: f32[32,64], index: 1, kind: input, shape index: {}]
  %s2 = inlined_call_operand.vmem [shape: f32[1,64], index: 2, kind: input, shape index: {}]
  %s3 = inlined_call_operand.vmem [shape: f32[64,64], index: 3, kind: input, shape index: {}]
  %s4 = inlined_call_operand.hbm [shape: f32[1,64], index: 4, kind: input, shape index: {}]
  %s5 = inlined_call_operand.vmem [shape: f32[64,32], index: 5, kind: input, shape index: {}]
  %s6 = inlined_call_operand.hbm [shape: f32[1,32], index: 6, kind: input, shape index: {}]
  %s7 = inlined_call_operand.vmem [shape: f32[32,32], index: 7, kind: input, shape index: {}]
  %s8 = inlined_call_operand.hbm [shape: f32[1,32], index: 8, kind: input, shape index: {}]
  %s9 = inlined_call_operand.vmem [shape: f32[32,32], index: 9, kind: input, shape index: {}]
  %s10 = inlined_call_operand.hbm [shape: f32[1,32], index: 10, kind: input, shape index: {}]
  %s11 = inlined_call_operand.vmem [shape: f32[32,32], index: 11, kind: input, shape index: {}]
  %s12 = inlined_call_operand.hbm [shape: f32[1,32], index: 12, kind: input, shape index: {}]
  %s13 = inlined_call_operand.vmem [shape: f32[32,32], index: 13, kind: input, shape index: {}]
  %s14 = inlined_call_operand.hbm [shape: f32[1,32], index: 14, kind: input, shape index: {}]
  %s15 = inlined_call_operand.hbm [shape: f32[32,32], index: 15, kind: input, shape index: {}]
  %s16 = inlined_call_operand.hbm [shape: f32[1,32], index: 16, kind: input, shape index: {}]
  %s17 = inlined_call_operand.vmem [shape: f32[32,32], index: 17, kind: input, shape index: {}]
  %s18 = inlined_call_operand.hbm [shape: f32[1,32], index: 18, kind: input, shape index: {}]
  %s19 = inlined_call_operand.hbm [shape: f32[32,32], index: 19, kind: input, shape index: {}]
  %s20 = inlined_call_operand.vmem [shape: f32[1,32], index: 20, kind: input, shape index: {}]
  %s21 = inlined_call_operand.vmem [shape: f32[1,32], index: 21, kind: input, shape index: {}]
  %s22 = inlined_call_operand.<no memory space> [shape: f32[1,1], index: 22, kind: input, shape index: {}]
  %s23 = inlined_call_operand.hbm [shape: f32[2,1,8], index: 23, kind: output, shape index: {}]
  %s24 = sld [smem:[#allocation0]]
  $region165: #{tpu_custom_call.1} parent=0
    _
  %s26 = ssub.s32 1, %s24
  %s27 = scalar_select 0, %s26, %s24
  %v28 = vstv %s22
  %29 = vst [vmem:[#allocation2] sm:$0x1] %v28
  $region1: #{tpu_custom_call.1} parent=0
    #allocation3 [shape = 'u8[512]{0}', space=vmem, size = 0x400, scoped, tag = 'input window, operand 4, single buffered']
    #allocation4 [shape = 's32[2]{0}', space=sflag, size = 0x8, scoped, tag = 'scoped memory for tpu_custom_call.1']
    #allocation5 [shape = 's32[2]{0}', space=sflag, size = 0x8, scoped, tag = 'scoped memory for tpu_custom_call.1']
    #allocation6 [shape = 'u8[512]{0}', space=vmem, size = 0x400, scoped, tag = 'input window, operand 6, single buffered']
    #allocation7 [shape = 's32[1]{0}', space=sflag, size = 0x4, scoped, tag = 'scoped memory for tpu_custom_call.1']
    #allocation8 [shape = 'u8[512]{0}', space=vmem, size = 0x400, scoped, tag = 'input window, operand 8, single buffered']
    #allocation9 [shape = 'u8[512]{0}', space=vmem, size = 0x400, scoped, tag = 'input window, operand 10, single buffered']
    #allocation10 [shape = 's32[1]{0}', space=sflag, size = 0x4, scoped, tag = 'scoped memory for tpu_custom_call.1']
    #allocation11 [shape = 'u8[512]{0}', space=vmem, size = 0x400, scoped, tag = 'input window, operand 12, single buffered']
    #allocation12 [shape = 'u8[512]{0}', space=vmem, size = 0x400, scoped, tag = 'input window, operand 14, single buffered']
    #allocation13 [shape = 's32[1]{0}', space=sflag, size = 0x4, scoped, tag = 'scoped memory for tpu_custom_call.1']
    #allocation14 [shape = 'u8[16384]{0}', space=vmem, size = 0x4000, scoped, tag = 'input window, operand 15, single buffered']
    #allocation15 [shape = 'u8[512]{0}', space=vmem, size = 0x400, scoped, tag = 'input window, operand 16, single buffered']
    #allocation16 [shape = 's32[1]{0}', space=sflag, size = 0x4, scoped, tag = 'scoped memory for tpu_custom_call.1']
    #allocation17 [shape = 'u8[512]{0}', space=vmem, size = 0x400, scoped, tag = 'input window, operand 18, single buffered']
    #allocation18 [shape = 'u8[16384]{0}', space=vmem, size = 0x4000, scoped, tag = 'input window, operand 19, single buffered']
    #allocation19 [shape = 's32[1]{0}', space=sflag, size = 0x4, scoped, tag = 'scoped memory for tpu_custom_call.1']
    #allocation20 [shape = 'u8[1024]{0}', space=vmem, size = 0x400, scoped, tag = 'output window, operand 0']
    %30 = vsyncpa [#allocation4], 0
    %31 = vsyncpa [#allocation7], 0
    %32 = vsyncpa [#allocation10], 0
    %33 = vsyncpa [#allocation13], 0
    %34 = vsyncpa [#allocation16], 0
    %35 = vsyncpa [#allocation19], 0
    %36 = vsyncpa [#allocation5], 0
    %s37 = scalar_lea.sflag [#allocation5], 1
    %38 = vsyncpa %s37, 0
    loop: start=0, step=1, limit=4
    $region2: #{tpu_custom_call.1} parent=1 // loop_pre_header
      _
    $region3: #{tpu_custom_call.1} parent=1 // loop_header
      %s40 = sphi 0, %s44
      %p41 = scmp.ge.s32.totalorder %s40, 4
      %s50 = sphi 0, %s52
      %s53 = sphi 0, %s50
      %s54 = sphi 0, %s53
      %s70 = sphi 0, %s54
      %s74 = sphi 0, %s74
      %s76 = sphi 0, %s74
      %s77 = sphi 0, %s76
      %s91 = sphi 0, %s77
      %s95 = sphi 0, %s95
      %s97 = sphi 0, %s95
      %s98 = sphi 0, %s97
      %s112 = sphi 0, %s98
      %s116 = sphi 0, %s116
      %s118 = sphi 0, %s116
      %s119 = sphi 0, %s118
      %s133 = sphi 0, %s119
      %s137 = sphi 0, %s137
      %s139 = sphi 0, %s137
      %s140 = sphi 0, %s139
      %s154 = sphi 0, %s140
      %s158 = sphi 0, %s158
      %s160 = sphi 0, %s158
      %s161 = sphi 0, %s160
      %s175 = sphi 0, %s161
      %s179 = sphi 0, %s179
      %s181 = sphi 0, %s179
      %s182 = sphi 0, %s181
      %s196 = sphi 0, %s182
      %s200 = sphi 0, %s200
      %s202 = sphi 0, %s200
      %s203 = sphi 0, %s202
      %s217 = sphi 0, %s203
      %s221 = sphi 0, %s221
      %s223 = sphi 0, %s221
      %s224 = sphi 0, %s223
      %s238 = sphi 0, %s224
      %s242 = sphi 0, %s242
      %s244 = sphi 0, %s242
      %s245 = sphi 0, %s244
      %s259 = sphi 0, %s245
      %s263 = sphi 0, %s263
      %s265 = sphi 0, %s263
      %s266 = sphi 0, %s265
      %s280 = sphi 0, %s266
      %s284 = sphi 0, %s284
      %s286 = sphi 0, %s284
      %s287 = sphi 0, %s286
      %s301 = sphi 0, %s287
      %s305 = sphi 0, %s305
      %s307 = sphi 0, %s305
      %s308 = sphi 0, %s307
      %s322 = sphi 0, %s308
      %s326 = sphi 0, %s326
      %s328 = sphi 0, %s326
      %s329 = sphi 0, %s328
      %s343 = sphi 0, %s329
      %s347 = sphi 0, %s347
      %s349 = sphi 0, %s347
      %s350 = sphi 0, %s349
      %s364 = sphi 0, %s350
      %s368 = sphi 0, %s368
      %s370 = sphi 0, %s368
      %s371 = sphi 0, %s370
      %s385 = sphi 0, %s371
      %s389 = sphi 0, %s389
      %s391 = sphi 0, %s389
      %s392 = sphi 0, %s391
      %s406 = sphi 0, %s392
      %s410 = sphi 0, %s410
      %s412 = sphi 0, %s410
      %s413 = sphi 0, %s412
      %s427 = sphi 0, %s413
      %s431 = sphi 0, %s431
      %s433 = sphi 0, %s431
      %s434 = sphi 0, %s433
      %s448 = sphi 0, %s434
      %s452 = sphi 0, %s452
      %s454 = sphi 0, %s452
      %s455 = sphi 0, %s454
      %s469 = sphi 0, %s455
      %s473 = sphi 0, %s473
      %s475 = sphi 0, %s473
      %s476 = sphi 0, %s475
      %s490 = sphi 0, %s476
      %s494 = sphi 0, %s494
      %s496 = sphi 0, %s494
      %s497 = sphi 0, %s496
      %s511 = sphi 0, %s497
      %s515 = sphi 0, %s515
      %s517 = sphi 0, %s515
      %s518 = sphi 0, %s517
      %s532 = sphi 0, %s518
      %s538 = sphi 0, %s540
      %s541 = sphi 0, %s538
      %s542 = sphi 0, %s541
      %s558 = sphi 0, %s542
    $region4: #{tpu_custom_call.1} parent=1 // loop_header_branch
      %43 = sbr.rel (%p41) target = $region8
    $region5: #{tpu_custom_call.1} parent=1 // loop_body
      %s45 = ssub.s32 %s40, 1
      %s46 = ssub.s32 %s40, 2
      %s47 = sadd.s32 %s40, 1
      %s48 = ssub.s32 %s40, %s47
      %p49 = scmp.eq.s32.totalorder %s48, 0
      %s51 = sadd.s32 %s50, 1
      %s52 = scalar_select %p49, %s50, %s51
      %p55 = pneg %p49
      %p56 = scmp.eq.s32.totalorder %s40, 1
      %p57 = por %p55, %p56
      %p58 = scmp.ne.s32.totalorder %s50, %s53
      %p59 = scmp.eq.s32.totalorder %s40, 0
      %p60 = por %p58, %p59
      %p61 = scmp.ne.s32.totalorder %s50, %s53
      %p62 = scmp.eq.s32.totalorder %s45, 1
      %p63 = por %p61, %p62
      %p64 = scmp.ne.s32.totalorder %s53, %s54
      %p65 = scmp.eq.s32.totalorder %s45, 0
      %p66 = por %p64, %p65
      %p67 = scmp.ne.s32.totalorder %s53, %s54
      %p68 = scmp.eq.s32.totalorder %s46, 1
      %p69 = por %p67, %p68
      %p71 = scmp.ne.s32.totalorder %s54, %s70
      %p72 = scmp.eq.s32.totalorder %s46, 0
      %p73 = por %p71, %p72
      %s75 = sadd.s32 %s74, 1
      %p78 = scmp.eq.s32.totalorder %s40, 1
      %p79 = scmp.ne.s32.totalorder %s74, %s76
      %p80 = scmp.eq.s32.totalorder %s40, 0
      %p81 = por %p79, %p80
      %p82 = scmp.ne.s32.totalorder %s74, %s76
      %p83 = scmp.eq.s32.totalorder %s45, 1
      %p84 = por %p82, %p83
      %p85 = scmp.ne.s32.totalorder %s76, %s77
      %p86 = scmp.eq.s32.totalorder %s45, 0
      %p87 = por %p85, %p86
      %p88 = scmp.ne.s32.totalorder %s76, %s77
      %p89 = scmp.eq.s32.totalorder %s46, 1
      %p90 = por %p88, %p89
      %p92 = scmp.ne.s32.totalorder %s77, %s91
      %p93 = scmp.eq.s32.totalorder %s46, 0
      %p94 = por %p92, %p93
      %s96 = sadd.s32 %s95, 1
      %p99 = scmp.eq.s32.totalorder %s40, 1
      %p100 = scmp.ne.s32.totalorder %s95, %s97
      %p101 = scmp.eq.s32.totalorder %s40, 0
      %p102 = por %p100, %p101
      %p103 = scmp.ne.s32.totalorder %s95, %s97
      %p104 = scmp.eq.s32.totalorder %s45, 1
      %p105 = por %p103, %p104
      %p106 = scmp.ne.s32.totalorder %s97, %s98
      %p107 = scmp.eq.s32.totalorder %s45, 0
      %p108 = por %p106, %p107
      %p109 = scmp.ne.s32.totalorder %s97, %s98
      %p110 = scmp.eq.s32.totalorder %s46, 1
      %p111 = por %p109, %p110
      %p113 = scmp.ne.s32.totalorder %s98, %s112
      %p114 = scmp.eq.s32.totalorder %s46, 0
      %p115 = por %p113, %p114
      %s117 = sadd.s32 %s116, 1
      %p120 = scmp.eq.s32.totalorder %s40, 1
      %p121 = scmp.ne.s32.totalorder %s116, %s118
      %p122 = scmp.eq.s32.totalorder %s40, 0
      %p123 = por %p121, %p122
      %p124 = scmp.ne.s32.totalorder %s116, %s118
      %p125 = scmp.eq.s32.totalorder %s45, 1
      %p126 = por %p124, %p125
      %p127 = scmp.ne.s32.totalorder %s118, %s119
      %p128 = scmp.eq.s32.totalorder %s45, 0
      %p129 = por %p127, %p128
      %p130 = scmp.ne.s32.totalorder %s118, %s119
      %p131 = scmp.eq.s32.totalorder %s46, 1
      %p132 = por %p130, %p131
      %p134 = scmp.ne.s32.totalorder %s119, %s133
      %p135 = scmp.eq.s32.totalorder %s46, 0
      %p136 = por %p134, %p135
      %s138 = sadd.s32 %s137, 1
      %p141 = scmp.eq.s32.totalorder %s40, 1
      %p142 = scmp.ne.s32.totalorder %s137, %s139
      %p143 = scmp.eq.s32.totalorder %s40, 0
      %p144 = por %p142, %p143
      %p145 = scmp.ne.s32.totalorder %s137, %s139
      %p146 = scmp.eq.s32.totalorder %s45, 1
      %p147 = por %p145, %p146
      %p148 = scmp.ne.s32.totalorder %s139, %s140
      %p149 = scmp.eq.s32.totalorder %s45, 0
      %p150 = por %p148, %p149
      %p151 = scmp.ne.s32.totalorder %s139, %s140
      %p152 = scmp.eq.s32.totalorder %s46, 1
      %p153 = por %p151, %p152
      %p155 = scmp.ne.s32.totalorder %s140, %s154
      %p156 = scmp.eq.s32.totalorder %s46, 0
      %p157 = por %p155, %p156
      %s159 = sadd.s32 %s158, 1
      %p162 = scmp.eq.s32.totalorder %s40, 1
      %p163 = scmp.ne.s32.totalorder %s158, %s160
      %p164 = scmp.eq.s32.totalorder %s40, 0
      %p165 = por %p163, %p164
      %p166 = scmp.ne.s32.totalorder %s158, %s160
      %p167 = scmp.eq.s32.totalorder %s45, 1
      %p168 = por %p166, %p167
      %p169 = scmp.ne.s32.totalorder %s160, %s161
      %p170 = scmp.eq.s32.totalorder %s45, 0
      %p171 = por %p169, %p170
      %p172 = scmp.ne.s32.totalorder %s160, %s161
      %p173 = scmp.eq.s32.totalorder %s46, 1
      %p174 = por %p172, %p173
      %p176 = scmp.ne.s32.totalorder %s161, %s175
      %p177 = scmp.eq.s32.totalorder %s46, 0
      %p178 = por %p176, %p177
      %s180 = sadd.s32 %s179, 1
      %p183 = scmp.eq.s32.totalorder %s40, 1
      %p184 = scmp.ne.s32.totalorder %s179, %s181
      %p185 = scmp.eq.s32.totalorder %s40, 0
      %p186 = por %p184, %p185
      %p187 = scmp.ne.s32.totalorder %s179, %s181
      %p188 = scmp.eq.s32.totalorder %s45, 1
      %p189 = por %p187, %p188
      %p190 = scmp.ne.s32.totalorder %s181, %s182
      %p191 = scmp.eq.s32.totalorder %s45, 0
      %p192 = por %p190, %p191
      %p193 = scmp.ne.s32.totalorder %s181, %s182
      %p194 = scmp.eq.s32.totalorder %s46, 1
      %p195 = por %p193, %p194
      %p197 = scmp.ne.s32.totalorder %s182, %s196
      %p198 = scmp.eq.s32.totalorder %s46, 0
      %p199 = por %p197, %p198
      %s201 = sadd.s32 %s200, 1
      %p204 = scmp.eq.s32.totalorder %s40, 1
      %p205 = scmp.ne.s32.totalorder %s200, %s202
      %p206 = scmp.eq.s32.totalorder %s40, 0
      %p207 = por %p205, %p206
      %p208 = scmp.ne.s32.totalorder %s200, %s202
      %p209 = scmp.eq.s32.totalorder %s45, 1
      %p210 = por %p208, %p209
      %p211 = scmp.ne.s32.totalorder %s202, %s203
      %p212 = scmp.eq.s32.totalorder %s45, 0
      %p213 = por %p211, %p212
      %p214 = scmp.ne.s32.totalorder %s202, %s203
      %p215 = scmp.eq.s32.totalorder %s46, 1
      %p216 = por %p214, %p215
      %p218 = scmp.ne.s32.totalorder %s203, %s217
      %p219 = scmp.eq.s32.totalorder %s46, 0
      %p220 = por %p218, %p219
      %s222 = sadd.s32 %s221, 1
      %p225 = scmp.eq.s32.totalorder %s40, 1
      %p226 = scmp.ne.s32.totalorder %s221, %s223
      %p227 = scmp.eq.s32.totalorder %s40, 0
      %p228 = por %p226, %p227
      %p229 = scmp.ne.s32.totalorder %s221, %s223
      %p230 = scmp.eq.s32.totalorder %s45, 1
      %p231 = por %p229, %p230
      %p232 = scmp.ne.s32.totalorder %s223, %s224
      %p233 = scmp.eq.s32.totalorder %s45, 0
      %p234 = por %p232, %p233
      %p235 = scmp.ne.s32.totalorder %s223, %s224
      %p236 = scmp.eq.s32.totalorder %s46, 1
      %p237 = por %p235, %p236
      %p239 = scmp.ne.s32.totalorder %s224, %s238
      %p240 = scmp.eq.s32.totalorder %s46, 0
      %p241 = por %p239, %p240
      %s243 = sadd.s32 %s242, 1
      %p246 = scmp.eq.s32.totalorder %s40, 1
      %p247 = scmp.ne.s32.totalorder %s242, %s244
      %p248 = scmp.eq.s32.totalorder %s40, 0
      %p249 = por %p247, %p248
      %p250 = scmp.ne.s32.totalorder %s242, %s244
      %p251 = scmp.eq.s32.totalorder %s45, 1
      %p252 = por %p250, %p251
      %p253 = scmp.ne.s32.totalorder %s244, %s245
      %p254 = scmp.eq.s32.totalorder %s45, 0
      %p255 = por %p253, %p254
      %p256 = scmp.ne.s32.totalorder %s244, %s245
      %p257 = scmp.eq.s32.totalorder %s46, 1
      %p258 = por %p256, %p257
      %p260 = scmp.ne.s32.totalorder %s245, %s259
      %p261 = scmp.eq.s32.totalorder %s46, 0
      %p262 = por %p260, %p261
      %s264 = sadd.s32 %s263, 1
      %p267 = scmp.eq.s32.totalorder %s40, 1
      %p268 = scmp.ne.s32.totalorder %s263, %s265
      %p269 = scmp.eq.s32.totalorder %s40, 0
      %p270 = por %p268, %p269
      %p271 = scmp.ne.s32.totalorder %s263, %s265
      %p272 = scmp.eq.s32.totalorder %s45, 1
      %p273 = por %p271, %p272
      %p274 = scmp.ne.s32.totalorder %s265, %s266
      %p275 = scmp.eq.s32.totalorder %s45, 0
      %p276 = por %p274, %p275
      %p277 = scmp.ne.s32.totalorder %s265, %s266
      %p278 = scmp.eq.s32.totalorder %s46, 1
      %p279 = por %p277, %p278
      %p281 = scmp.ne.s32.totalorder %s266, %s280
      %p282 = scmp.eq.s32.totalorder %s46, 0
      %p283 = por %p281, %p282
      %s285 = sadd.s32 %s284, 1
      %p288 = scmp.eq.s32.totalorder %s40, 1
      %p289 = scmp.ne.s32.totalorder %s284, %s286
      %p290 = scmp.eq.s32.totalorder %s40, 0
      %p291 = por %p289, %p290
      %p292 = scmp.ne.s32.totalorder %s284, %s286
      %p293 = scmp.eq.s32.totalorder %s45, 1
      %p294 = por %p292, %p293
      %p295 = scmp.ne.s32.totalorder %s286, %s287
      %p296 = scmp.eq.s32.totalorder %s45, 0
      %p297 = por %p295, %p296
      %p298 = scmp.ne.s32.totalorder %s286, %s287
      %p299 = scmp.eq.s32.totalorder %s46, 1
      %p300 = por %p298, %p299
      %p302 = scmp.ne.s32.totalorder %s287, %s301
      %p303 = scmp.eq.s32.totalorder %s46, 0
      %p304 = por %p302, %p303
      %s306 = sadd.s32 %s305, 1
      %p309 = scmp.eq.s32.totalorder %s40, 1
      %p310 = scmp.ne.s32.totalorder %s305, %s307
      %p311 = scmp.eq.s32.totalorder %s40, 0
      %p312 = por %p310, %p311
      %p313 = scmp.ne.s32.totalorder %s305, %s307
      %p314 = scmp.eq.s32.totalorder %s45, 1
      %p315 = por %p313, %p314
      %p316 = scmp.ne.s32.totalorder %s307, %s308
      %p317 = scmp.eq.s32.totalorder %s45, 0
      %p318 = por %p316, %p317
      %p319 = scmp.ne.s32.totalorder %s307, %s308
      %p320 = scmp.eq.s32.totalorder %s46, 1
      %p321 = por %p319, %p320
      %p323 = scmp.ne.s32.totalorder %s308, %s322
      %p324 = scmp.eq.s32.totalorder %s46, 0
      %p325 = por %p323, %p324
      %s327 = sadd.s32 %s326, 1
      %p330 = scmp.eq.s32.totalorder %s40, 1
      %p331 = scmp.ne.s32.totalorder %s326, %s328
      %p332 = scmp.eq.s32.totalorder %s40, 0
      %p333 = por %p331, %p332
      %p334 = scmp.ne.s32.totalorder %s326, %s328
      %p335 = scmp.eq.s32.totalorder %s45, 1
      %p336 = por %p334, %p335
      %p337 = scmp.ne.s32.totalorder %s328, %s329
      %p338 = scmp.eq.s32.totalorder %s45, 0
      %p339 = por %p337, %p338
      %p340 = scmp.ne.s32.totalorder %s328, %s329
      %p341 = scmp.eq.s32.totalorder %s46, 1
      %p342 = por %p340, %p341
      %p344 = scmp.ne.s32.totalorder %s329, %s343
      %p345 = scmp.eq.s32.totalorder %s46, 0
      %p346 = por %p344, %p345
      %s348 = sadd.s32 %s347, 1
      %p351 = scmp.eq.s32.totalorder %s40, 1
      %p352 = scmp.ne.s32.totalorder %s347, %s349
      %p353 = scmp.eq.s32.totalorder %s40, 0
      %p354 = por %p352, %p353
      %p355 = scmp.ne.s32.totalorder %s347, %s349
      %p356 = scmp.eq.s32.totalorder %s45, 1
      %p357 = por %p355, %p356
      %p358 = scmp.ne.s32.totalorder %s349, %s350
      %p359 = scmp.eq.s32.totalorder %s45, 0
      %p360 = por %p358, %p359
      %p361 = scmp.ne.s32.totalorder %s349, %s350
      %p362 = scmp.eq.s32.totalorder %s46, 1
      %p363 = por %p361, %p362
      %p365 = scmp.ne.s32.totalorder %s350, %s364
      %p366 = scmp.eq.s32.totalorder %s46, 0
      %p367 = por %p365, %p366
      %s369 = sadd.s32 %s368, 1
      %p372 = scmp.eq.s32.totalorder %s40, 1
      %p373 = scmp.ne.s32.totalorder %s368, %s370
      %p374 = scmp.eq.s32.totalorder %s40, 0
      %p375 = por %p373, %p374
      %p376 = scmp.ne.s32.totalorder %s368, %s370
      %p377 = scmp.eq.s32.totalorder %s45, 1
      %p378 = por %p376, %p377
      %p379 = scmp.ne.s32.totalorder %s370, %s371
      %p380 = scmp.eq.s32.totalorder %s45, 0
      %p381 = por %p379, %p380
      %p382 = scmp.ne.s32.totalorder %s370, %s371
      %p383 = scmp.eq.s32.totalorder %s46, 1
      %p384 = por %p382, %p383
      %p386 = scmp.ne.s32.totalorder %s371, %s385
      %p387 = scmp.eq.s32.totalorder %s46, 0
      %p388 = por %p386, %p387
      %s390 = sadd.s32 %s389, 1
      %p393 = scmp.eq.s32.totalorder %s40, 1
      %p394 = scmp.ne.s32.totalorder %s389, %s391
      %p395 = scmp.eq.s32.totalorder %s40, 0
      %p396 = por %p394, %p395
      %p397 = scmp.ne.s32.totalorder %s389, %s391
      %p398 = scmp.eq.s32.totalorder %s45, 1
      %p399 = por %p397, %p398
      %p400 = scmp.ne.s32.totalorder %s391, %s392
      %p401 = scmp.eq.s32.totalorder %s45, 0
      %p402 = por %p400, %p401
      %p403 = scmp.ne.s32.totalorder %s391, %s392
      %p404 = scmp.eq.s32.totalorder %s46, 1
      %p405 = por %p403, %p404
      %p407 = scmp.ne.s32.totalorder %s392, %s406
      %p408 = scmp.eq.s32.totalorder %s46, 0
      %p409 = por %p407, %p408
      %s411 = sadd.s32 %s410, 1
      %p414 = scmp.eq.s32.totalorder %s40, 1
      %p415 = scmp.ne.s32.totalorder %s410, %s412
      %p416 = scmp.eq.s32.totalorder %s40, 0
      %p417 = por %p415, %p416
      %p418 = scmp.ne.s32.totalorder %s410, %s412
      %p419 = scmp.eq.s32.totalorder %s45, 1
      %p420 = por %p418, %p419
      %p421 = scmp.ne.s32.totalorder %s412, %s413
      %p422 = scmp.eq.s32.totalorder %s45, 0
      %p423 = por %p421, %p422
      %p424 = scmp.ne.s32.totalorder %s412, %s413
      %p425 = scmp.eq.s32.totalorder %s46, 1
      %p426 = por %p424, %p425
      %p428 = scmp.ne.s32.totalorder %s413, %s427
      %p429 = scmp.eq.s32.totalorder %s46, 0
      %p430 = por %p428, %p429
      %s432 = sadd.s32 %s431, 1
      %p435 = scmp.eq.s32.totalorder %s40, 1
      %p436 = scmp.ne.s32.totalorder %s431, %s433
      %p437 = scmp.eq.s32.totalorder %s40, 0
      %p438 = por %p436, %p437
      %p439 = scmp.ne.s32.totalorder %s431, %s433
      %p440 = scmp.eq.s32.totalorder %s45, 1
      %p441 = por %p439, %p440
      %p442 = scmp.ne.s32.totalorder %s433, %s434
      %p443 = scmp.eq.s32.totalorder %s45, 0
      %p444 = por %p442, %p443
      %p445 = scmp.ne.s32.totalorder %s433, %s434
      %p446 = scmp.eq.s32.totalorder %s46, 1
      %p447 = por %p445, %p446
      %p449 = scmp.ne.s32.totalorder %s434, %s448
      %p450 = scmp.eq.s32.totalorder %s46, 0
      %p451 = por %p449, %p450
      %s453 = sadd.s32 %s452, 1
      %p456 = scmp.eq.s32.totalorder %s40, 1
      %p457 = scmp.ne.s32.totalorder %s452, %s454
      %p458 = scmp.eq.s32.totalorder %s40, 0
      %p459 = por %p457, %p458
      %p460 = scmp.ne.s32.totalorder %s452, %s454
      %p461 = scmp.eq.s32.totalorder %s45, 1
      %p462 = por %p460, %p461
      %p463 = scmp.ne.s32.totalorder %s454, %s455
      %p464 = scmp.eq.s32.totalorder %s45, 0
      %p465 = por %p463, %p464
      %p466 = scmp.ne.s32.totalorder %s454, %s455
      %p467 = scmp.eq.s32.totalorder %s46, 1
      %p468 = por %p466, %p467
      %p470 = scmp.ne.s32.totalorder %s455, %s469
      %p471 = scmp.eq.s32.totalorder %s46, 0
      %p472 = por %p470, %p471
      %s474 = sadd.s32 %s473, 1
      %p477 = scmp.eq.s32.totalorder %s40, 1
      %p478 = scmp.ne.s32.totalorder %s473, %s475
      %p479 = scmp.eq.s32.totalorder %s40, 0
      %p480 = por %p478, %p479
      %p481 = scmp.ne.s32.totalorder %s473, %s475
      %p482 = scmp.eq.s32.totalorder %s45, 1
      %p483 = por %p481, %p482
      %p484 = scmp.ne.s32.totalorder %s475, %s476
      %p485 = scmp.eq.s32.totalorder %s45, 0
      %p486 = por %p484, %p485
      %p487 = scmp.ne.s32.totalorder %s475, %s476
      %p488 = scmp.eq.s32.totalorder %s46, 1
      %p489 = por %p487, %p488
      %p491 = scmp.ne.s32.totalorder %s476, %s490
      %p492 = scmp.eq.s32.totalorder %s46, 0
      %p493 = por %p491, %p492
      %s495 = sadd.s32 %s494, 1
      %p498 = scmp.eq.s32.totalorder %s40, 1
      %p499 = scmp.ne.s32.totalorder %s494, %s496
      %p500 = scmp.eq.s32.totalorder %s40, 0
      %p501 = por %p499, %p500
      %p502 = scmp.ne.s32.totalorder %s494, %s496
      %p503 = scmp.eq.s32.totalorder %s45, 1
      %p504 = por %p502, %p503
      %p505 = scmp.ne.s32.totalorder %s496, %s497
      %p506 = scmp.eq.s32.totalorder %s45, 0
      %p507 = por %p505, %p506
      %p508 = scmp.ne.s32.totalorder %s496, %s497
      %p509 = scmp.eq.s32.totalorder %s46, 1
      %p510 = por %p508, %p509
      %p512 = scmp.ne.s32.totalorder %s497, %s511
      %p513 = scmp.eq.s32.totalorder %s46, 0
      %p514 = por %p512, %p513
      %s516 = sadd.s32 %s515, 1
      %p519 = scmp.eq.s32.totalorder %s40, 1
      %p520 = scmp.ne.s32.totalorder %s515, %s517
      %p521 = scmp.eq.s32.totalorder %s40, 0
      %p522 = por %p520, %p521
      %p523 = scmp.ne.s32.totalorder %s515, %s517
      %p524 = scmp.eq.s32.totalorder %s45, 1
      %p525 = por %p523, %p524
      %p526 = scmp.ne.s32.totalorder %s517, %s518
      %p527 = scmp.eq.s32.totalorder %s45, 0
      %p528 = por %p526, %p527
      %p529 = scmp.ne.s32.totalorder %s517, %s518
      %p530 = scmp.eq.s32.totalorder %s46, 1
      %p531 = por %p529, %p530
      %p533 = scmp.ne.s32.totalorder %s518, %s532
      %p534 = scmp.eq.s32.totalorder %s46, 0
      %p535 = por %p533, %p534
      %s536 = ssub.s32 %s40, %s47
      %p537 = scmp.eq.s32.totalorder %s536, 0
      %s539 = sadd.s32 %s538, 1
      %s540 = scalar_select %p537, %s538, %s539
      %p543 = pneg %p537
      %p544 = scmp.eq.s32.totalorder %s40, 1
      %p545 = por %p543, %p544
      %p546 = scmp.ne.s32.totalorder %s538, %s541
      %p547 = scmp.eq.s32.totalorder %s40, 0
      %p548 = por %p546, %p547
      %p549 = scmp.ne.s32.totalorder %s538, %s541
      %p550 = scmp.eq.s32.totalorder %s45, 1
      %p551 = por %p549, %p550
      %p552 = scmp.ne.s32.totalorder %s541, %s542
      %p553 = scmp.eq.s32.totalorder %s45, 0
      %p554 = por %p552, %p553
      %p555 = scmp.ne.s32.totalorder %s541, %s542
      %p556 = scmp.eq.s32.totalorder %s46, 1
      %p557 = por %p555, %p556
      %p559 = scmp.ne.s32.totalorder %s542, %s558
      %p560 = scmp.eq.s32.totalorder %s46, 0
      %p561 = por %p559, %p560
      %p562 = scmp.le.s32.totalorder 1, %s40
      %p563 = scmp.lt.s32.totalorder %s40, 3
      %p564 = pnand %p562, %p563
      %p565 = pneg %p564
      // Predicated region
      $region9: #{tpu_custom_call.1} parent=5 // pred_check
        _
      $region10: #{tpu_custom_call.1} parent=5 // pred_check_branch
        %567 = sbr.rel (%p564) target = $region12
      $region11: #{tpu_custom_call.1} parent=5 // pred_region
        %s568 = ssub.s32 %s40, 1
        // Predicated region
        $region13: #{tpu_custom_call.1} parent=11 // pred_check
          %p569 = pneg %p87
        $region14: #{tpu_custom_call.1} parent=11 // pred_check_branch
          %571 = sbr.rel (%p569) target = $region16
        $region15: #{tpu_custom_call.1} parent=11 // pred_region
          _
        $region16: #{tpu_custom_call.1} parent=11 // pred_fallthru
          _
        // Predicated region
        $region17: #{tpu_custom_call.1} parent=11 // pred_check
          %p572 = pneg %p108
        $region18: #{tpu_custom_call.1} parent=11 // pred_check_branch
          %574 = sbr.rel (%p572) target = $region20
        $region19: #{tpu_custom_call.1} parent=11 // pred_region
          _
        $region20: #{tpu_custom_call.1} parent=11 // pred_fallthru
          _
        // Predicated region
        $region21: #{tpu_custom_call.1} parent=11 // pred_check
          %p575 = pneg %p129
        $region22: #{tpu_custom_call.1} parent=11 // pred_check_branch
          %577 = sbr.rel (%p575) target = $region24
        $region23: #{tpu_custom_call.1} parent=11 // pred_region
          _
        $region24: #{tpu_custom_call.1} parent=11 // pred_fallthru
          _
        // Predicated region
        $region25: #{tpu_custom_call.1} parent=11 // pred_check
          %p578 = pneg %p150
        $region26: #{tpu_custom_call.1} parent=11 // pred_check_branch
          %580 = sbr.rel (%p578) target = $region28
        $region27: #{tpu_custom_call.1} parent=11 // pred_region
          %s582 = ssub.s32 16, 16
          %583 = vsyncadd [#allocation4], %s582
          %s585 = sshll.u32 [#allocation3], 4
          %s586 = int_to_ptr.vmem [resolvable:$true] %s585
          %588 = dma.hbm_to_vmem [thread:$0]  %s4, 16, %s586, [#allocation4]
        $region28: #{tpu_custom_call.1} parent=11 // pred_fallthru
          _
        // Predicated region
        $region29: #{tpu_custom_call.1} parent=11 // pred_check
          %p589 = pneg %p171
        $region30: #{tpu_custom_call.1} parent=11 // pred_check_branch
          %591 = sbr.rel (%p589) target = $region32
        $region31: #{tpu_custom_call.1} parent=11 // pred_region
          _
        $region32: #{tpu_custom_call.1} parent=11 // pred_fallthru
          _
        // Predicated region
        $region33: #{tpu_custom_call.1} parent=11 // pred_check
          %p592 = pneg %p192
        $region34: #{tpu_custom_call.1} parent=11 // pred_check_branch
          %594 = sbr.rel (%p592) target = $region36
        $region35: #{tpu_custom_call.1} parent=11 // pred_region
          %s596 = ssub.s32 16, 16
          %597 = vsyncadd [#allocation7], %s596
          %s599 = sshll.u32 [#allocation6], 4
          %s600 = int_to_ptr.vmem [resolvable:$true] %s599
          %602 = dma.hbm_to_vmem [thread:$0]  %s6, 16, %s600, [#allocation7]
        $region36: #{tpu_custom_call.1} parent=11 // pred_fallthru
          _
        // Predicated region
        $region37: #{tpu_custom_call.1} parent=11 // pred_check
          %p603 = pneg %p213
        $region38: #{tpu_custom_call.1} parent=11 // pred_check_branch
          %605 = sbr.rel (%p603) target = $region40
        $region39: #{tpu_custom_call.1} parent=11 // pred_region
          _
        $region40: #{tpu_custom_call.1} parent=11 // pred_fallthru
          _
        // Predicated region
        $region41: #{tpu_custom_call.1} parent=11 // pred_check
          %p606 = pneg %p234
        $region42: #{tpu_custom_call.1} parent=11 // pred_check_branch
          %608 = sbr.rel (%p606) target = $region44
        $region43: #{tpu_custom_call.1} parent=11 // pred_region
          %s610 = ssub.s32 16, 16
          %611 = vsyncadd [#allocation7], %s610
          %s613 = sshll.u32 [#allocation8], 4
          %s614 = int_to_ptr.vmem [resolvable:$true] %s613
          %616 = dma.hbm_to_vmem [thread:$0]  %s8, 16, %s614, [#allocation7]
        $region44: #{tpu_custom_call.1} parent=11 // pred_fallthru
          _
        // Predicated region
        $region45: #{tpu_custom_call.1} parent=11 // pred_check
          %p617 = pneg %p255
        $region46: #{tpu_custom_call.1} parent=11 // pred_check_branch
          %619 = sbr.rel (%p617) target = $region48
        $region47: #{tpu_custom_call.1} parent=11 // pred_region
          _
        $region48: #{tpu_custom_call.1} parent=11 // pred_fallthru
          _
        // Predicated region
        $region49: #{tpu_custom_call.1} parent=11 // pred_check
          %p620 = pneg %p276
        $region50: #{tpu_custom_call.1} parent=11 // pred_check_branch
          %622 = sbr.rel (%p620) target = $region52
        $region51: #{tpu_custom_call.1} parent=11 // pred_region
          %s624 = ssub.s32 16, 16
          %625 = vsyncadd [#allocation10], %s624
          %s627 = sshll.u32 [#allocation9], 4
          %s628 = int_to_ptr.vmem [resolvable:$true] %s627
          %630 = dma.hbm_to_vmem [thread:$0]  %s10, 16, %s628, [#allocation10]
        $region52: #{tpu_custom_call.1} parent=11 // pred_fallthru
          _
        // Predicated region
        $region53: #{tpu_custom_call.1} parent=11 // pred_check
          %p631 = pneg %p297
        $region54: #{tpu_custom_call.1} parent=11 // pred_check_branch
          %633 = sbr.rel (%p631) target = $region56
        $region55: #{tpu_custom_call.1} parent=11 // pred_region
          _
        $region56: #{tpu_custom_call.1} parent=11 // pred_fallthru
          _
        // Predicated region
        $region57: #{tpu_custom_call.1} parent=11 // pred_check
          %p634 = pneg %p318
        $region58: #{tpu_custom_call.1} parent=11 // pred_check_branch
          %636 = sbr.rel (%p634) target = $region60
        $region59: #{tpu_custom_call.1} parent=11 // pred_region
          %s638 = ssub.s32 16, 16
          %639 = vsyncadd [#allocation10], %s638
          %s641 = sshll.u32 [#allocation11], 4
          %s642 = int_to_ptr.vmem [resolvable:$true] %s641
          %644 = dma.hbm_to_vmem [thread:$0]  %s12, 16, %s642, [#allocation10]
        $region60: #{tpu_custom_call.1} parent=11 // pred_fallthru
          _
        // Predicated region
        $region61: #{tpu_custom_call.1} parent=11 // pred_check
          %p645 = pneg %p339
        $region62: #{tpu_custom_call.1} parent=11 // pred_check_branch
          %647 = sbr.rel (%p645) target = $region64
        $region63: #{tpu_custom_call.1} parent=11 // pred_region
          _
        $region64: #{tpu_custom_call.1} parent=11 // pred_fallthru
          _
        // Predicated region
        $region65: #{tpu_custom_call.1} parent=11 // pred_check
          %p648 = pneg %p360
        $region66: #{tpu_custom_call.1} parent=11 // pred_check_branch
          %650 = sbr.rel (%p648) target = $region68
        $region67: #{tpu_custom_call.1} parent=11 // pred_region
          %s652 = ssub.s32 16, 16
          %653 = vsyncadd [#allocation13], %s652
          %s655 = sshll.u32 [#allocation12], 4
          %s656 = int_to_ptr.vmem [resolvable:$true] %s655
          %658 = dma.hbm_to_vmem [thread:$0]  %s14, 16, %s656, [#allocation13]
        $region68: #{tpu_custom_call.1} parent=11 // pred_fallthru
          _
        // Predicated region
        $region69: #{tpu_custom_call.1} parent=11 // pred_check
          %p659 = pneg %p381
        $region70: #{tpu_custom_call.1} parent=11 // pred_check_branch
          %661 = sbr.rel (%p659) target = $region72
        $region71: #{tpu_custom_call.1} parent=11 // pred_region
          %s663 = ssub.s32 512, 512
          %664 = vsyncadd [#allocation13], %s663
          %s665 = sshll.u32 [#allocation14], 4
          %s666 = int_to_ptr.vmem [resolvable:$true] %s665
          %671 = dma.hbm_to_vmem [thread:$0]  %s15, 512, %s666, [#allocation13], 128, 128, 8
        $region72: #{tpu_custom_call.1} parent=11 // pred_fallthru
          _
        // Predicated region
        $region73: #{tpu_custom_call.1} parent=11 // pred_check
          %p672 = pneg %p402
        $region74: #{tpu_custom_call.1} parent=11 // pred_check_branch
          %674 = sbr.rel (%p672) target = $region76
        $region75: #{tpu_custom_call.1} parent=11 // pred_region
          %s676 = ssub.s32 16, 16
          %677 = vsyncadd [#allocation16], %s676
          %s679 = sshll.u32 [#allocation15], 4
          %s680 = int_to_ptr.vmem [resolvable:$true] %s679
          %682 = dma.hbm_to_vmem [thread:$0]  %s16, 16, %s680, [#allocation16]
        $region76: #{tpu_custom_call.1} parent=11 // pred_fallthru
          _
        // Predicated region
        $region77: #{tpu_custom_call.1} parent=11 // pred_check
          %p683 = pneg %p423
        $region78: #{tpu_custom_call.1} parent=11 // pred_check_branch
          %685 = sbr.rel (%p683) target = $region80
        $region79: #{tpu_custom_call.1} parent=11 // pred_region
          _
        $region80: #{tpu_custom_call.1} parent=11 // pred_fallthru
          _
        // Predicated region
        $region81: #{tpu_custom_call.1} parent=11 // pred_check
          %p686 = pneg %p444
        $region82: #{tpu_custom_call.1} parent=11 // pred_check_branch
          %688 = sbr.rel (%p686) target = $region84
        $region83: #{tpu_custom_call.1} parent=11 // pred_region
          %s690 = ssub.s32 16, 16
          %691 = vsyncadd [#allocation16], %s690
          %s693 = sshll.u32 [#allocation17], 4
          %s694 = int_to_ptr.vmem [resolvable:$true] %s693
          %696 = dma.hbm_to_vmem [thread:$0]  %s18, 16, %s694, [#allocation16]
        $region84: #{tpu_custom_call.1} parent=11 // pred_fallthru
          _
        // Predicated region
        $region85: #{tpu_custom_call.1} parent=11 // pred_check
          %p697 = pneg %p465
        $region86: #{tpu_custom_call.1} parent=11 // pred_check_branch
          %699 = sbr.rel (%p697) target = $region88
        $region87: #{tpu_custom_call.1} parent=11 // pred_region
          %s701 = ssub.s32 512, 512
          %702 = vsyncadd [#allocation19], %s701
          %s703 = sshll.u32 [#allocation18], 4
          %s704 = int_to_ptr.vmem [resolvable:$true] %s703
          %709 = dma.hbm_to_vmem [thread:$0]  %s19, 512, %s704, [#allocation19], 128, 128, 8
        $region88: #{tpu_custom_call.1} parent=11 // pred_fallthru
          _
        // Predicated region
        $region89: #{tpu_custom_call.1} parent=11 // pred_check
          %p710 = pneg %p486
        $region90: #{tpu_custom_call.1} parent=11 // pred_check_branch
          %712 = sbr.rel (%p710) target = $region92
        $region91: #{tpu_custom_call.1} parent=11 // pred_region
          _
        $region92: #{tpu_custom_call.1} parent=11 // pred_fallthru
          _
        // Predicated region
        $region93: #{tpu_custom_call.1} parent=11 // pred_check
          %p713 = pneg %p507
        $region94: #{tpu_custom_call.1} parent=11 // pred_check_branch
          %715 = sbr.rel (%p713) target = $region96
        $region95: #{tpu_custom_call.1} parent=11 // pred_region
          _
        $region96: #{tpu_custom_call.1} parent=11 // pred_fallthru
          _
        // Predicated region
        $region97: #{tpu_custom_call.1} parent=11 // pred_check
          %p716 = pneg %p528
        $region98: #{tpu_custom_call.1} parent=11 // pred_check_branch
          %718 = sbr.rel (%p716) target = $region100
        $region99: #{tpu_custom_call.1} parent=11 // pred_region
          _
        $region100: #{tpu_custom_call.1} parent=11 // pred_fallthru
          _
      $region12: #{tpu_custom_call.1} parent=5 // pred_fallthru
        _
      %p719 = scmp.lt.s32.totalorder %s40, 2
      // Predicated region
      $region101: #{tpu_custom_call.1} parent=5 // pred_check
        %p720 = pneg %p719
      $region102: #{tpu_custom_call.1} parent=5 // pred_check_branch
        %722 = sbr.rel (%p720) target = $region104
      $region103: #{tpu_custom_call.1} parent=5 // pred_region
        // Predicated region
        $region105: #{tpu_custom_call.1} parent=103 // pred_check
          %p723 = pneg %p60
        $region106: #{tpu_custom_call.1} parent=103 // pred_check_branch
          %725 = sbr.rel (%p723) target = $region108
        $region107: #{tpu_custom_call.1} parent=103 // pred_region
          %p726 = scmp.lt.s32.totalorder %s40, 1
          %s727 = scalar_select %p726, %s40, 1
          %s728 = smul.addr %s727, 8
          %s729 = smul.addr %s728, 8
          %s730 = scalar_lea.vmem %s0, %s729
        $region108: #{tpu_custom_call.1} parent=103 // pred_fallthru
          _
      $region104: #{tpu_custom_call.1} parent=5 // pred_fallthru
        _
      %p731 = scmp.le.s32.totalorder 1, %s40
      %p732 = scmp.lt.s32.totalorder %s40, 3
      %p733 = pnand %p731, %p732
      %p734 = pneg %p733
      // Predicated region
      $region109: #{tpu_custom_call.1} parent=5 // pred_check
        _
      $region110: #{tpu_custom_call.1} parent=5 // pred_check_branch
        %736 = sbr.rel (%p733) target = $region112
      $region111: #{tpu_custom_call.1} parent=5 // pred_region
        %s737 = ssub.s32 %s40, 1
        // Predicated region
        $region113: #{tpu_custom_call.1} parent=111 // pred_check
          %p738 = pneg %p150
        $region114: #{tpu_custom_call.1} parent=111 // pred_check_branch
          %740 = sbr.rel (%p738) target = $region116
        $region115: #{tpu_custom_call.1} parent=111 // pred_region
          %741 = dma.done [#allocation4], 16
        $region116: #{tpu_custom_call.1} parent=111 // pred_fallthru
          _
        // Predicated region
        $region117: #{tpu_custom_call.1} parent=111 // pred_check
          %p742 = pneg %p192
        $region118: #{tpu_custom_call.1} parent=111 // pred_check_branch
          %744 = sbr.rel (%p742) target = $region120
        $region119: #{tpu_custom_call.1} parent=111 // pred_region
          %745 = dma.done [#allocation7], 16
        $region120: #{tpu_custom_call.1} parent=111 // pred_fallthru
          _
        // Predicated region
        $region121: #{tpu_custom_call.1} parent=111 // pred_check
          %p746 = pneg %p234
        $region122: #{tpu_custom_call.1} parent=111 // pred_check_branch
          %748 = sbr.rel (%p746) target = $region124
        $region123: #{tpu_custom_call.1} parent=111 // pred_region
          %749 = dma.done [#allocation7], 16
        $region124: #{tpu_custom_call.1} parent=111 // pred_fallthru
          _
        // Predicated region
        $region125: #{tpu_custom_call.1} parent=111 // pred_check
          %p750 = pneg %p276
        $region126: #{tpu_custom_call.1} parent=111 // pred_check_branch
          %752 = sbr.rel (%p750) target = $region128
        $region127: #{tpu_custom_call.1} parent=111 // pred_region
          %753 = dma.done [#allocation10], 16
        $region128: #{tpu_custom_call.1} parent=111 // pred_fallthru
          _
        // Predicated region
        $region129: #{tpu_custom_call.1} parent=111 // pred_check
          %p754 = pneg %p318
        $region130: #{tpu_custom_call.1} parent=111 // pred_check_branch
          %756 = sbr.rel (%p754) target = $region132
        $region131: #{tpu_custom_call.1} parent=111 // pred_region
          %757 = dma.done [#allocation10], 16
        $region132: #{tpu_custom_call.1} parent=111 // pred_fallthru
          _
        // Predicated region
        $region133: #{tpu_custom_call.1} parent=111 // pred_check
          %p758 = pneg %p360
        $region134: #{tpu_custom_call.1} parent=111 // pred_check_branch
          %760 = sbr.rel (%p758) target = $region136
        $region135: #{tpu_custom_call.1} parent=111 // pred_region
          %761 = dma.done [#allocation13], 16
        $region136: #{tpu_custom_call.1} parent=111 // pred_fallthru
          _
        // Predicated region
        $region137: #{tpu_custom_call.1} parent=111 // pred_check
          %p762 = pneg %p381
        $region138: #{tpu_custom_call.1} parent=111 // pred_check_branch
          %764 = sbr.rel (%p762) target = $region140
        $region139: #{tpu_custom_call.1} parent=111 // pred_region
          %765 = dma.done [#allocation13], 512
        $region140: #{tpu_custom_call.1} parent=111 // pred_fallthru
          _
        // Predicated region
        $region141: #{tpu_custom_call.1} parent=111 // pred_check
          %p766 = pneg %p402
        $region142: #{tpu_custom_call.1} parent=111 // pred_check_branch
          %768 = sbr.rel (%p766) target = $region144
        $region143: #{tpu_custom_call.1} parent=111 // pred_region
          %769 = dma.done [#allocation16], 16
        $region144: #{tpu_custom_call.1} parent=111 // pred_fallthru
          _
        // Predicated region
        $region145: #{tpu_custom_call.1} parent=111 // pred_check
          %p770 = pneg %p444
        $region146: #{tpu_custom_call.1} parent=111 // pred_check_branch
          %772 = sbr.rel (%p770) target = $region148
        $region147: #{tpu_custom_call.1} parent=111 // pred_region
          %773 = dma.done [#allocation16], 16
        $region148: #{tpu_custom_call.1} parent=111 // pred_fallthru
          _
        // Predicated region
        $region149: #{tpu_custom_call.1} parent=111 // pred_check
          %p774 = pneg %p465
        $region150: #{tpu_custom_call.1} parent=111 // pred_check_branch
          %776 = sbr.rel (%p774) target = $region152
        $region151: #{tpu_custom_call.1} parent=111 // pred_region
          %777 = dma.done [#allocation19], 512
        $region152: #{tpu_custom_call.1} parent=111 // pred_fallthru
          _
        %p778 = scmp.lt.s32.totalorder %s45, 1
        %s779 = scalar_select %p778, %s45, 1
        %s780 = smul.addr %s779, 8
        %s781 = smul.addr %s780, 8
        %s782 = scalar_lea.vmem %s0, %s781
        %p783 = pneg %p66
        %p784 = pneg %p63
        %p785 = pneg %p87
        %p786 = pneg %p84
        %p787 = pneg %p108
        %p788 = pneg %p105
        %p789 = pneg %p129
        %p790 = pneg %p126
        %p791 = pneg %p150
        %p792 = pneg %p147
        %p793 = pneg %p171
        %p794 = pneg %p168
        %p795 = pneg %p192
        %p796 = pneg %p189
        %p797 = pneg %p213
        %p798 = pneg %p210
        %p799 = pneg %p234
        %p800 = pneg %p231
        %p801 = pneg %p255
        %p802 = pneg %p252
        %p803 = pneg %p276
        %p804 = pneg %p273
        %p805 = pneg %p297
        %p806 = pneg %p294
        %p807 = pneg %p318
        %p808 = pneg %p315
        %p809 = pneg %p339
        %p810 = pneg %p336
        %p811 = pneg %p360
        %p812 = pneg %p357
        %p813 = pneg %p381
        %p814 = pneg %p378
        %p815 = pneg %p402
        %p816 = pneg %p399
        %p817 = pneg %p423
        %p818 = pneg %p420
        %p819 = pneg %p444
        %p820 = pneg %p441
        %p821 = pneg %p465
        %p822 = pneg %p462
        %p823 = pneg %p486
        %p824 = pneg %p483
        %p825 = pneg %p507
        %p826 = pneg %p504
        %p827 = pneg %p528
        %p828 = pneg %p525
        %p829 = pneg %p554
        %p830 = pneg %p551
        %s831 = sand.u32 %s541, 1
        %s832 = scalar_lea.sflag [#allocation5], %s831
        %s833 = sand.u32 %s541, 1
        %s834 = scalar_lea.vmem [#allocation20], %s833
        %p835 = scmp.lt.s32.totalorder %s45, 1
        %s836 = scalar_select %p835, %s45, 1
        %s837 = smul.addr %s836, 8
        %s838 = smul.addr %s837, 8
        %s839 = scalar_lea.vmem %s0, %s838
        %v840 = vld [vmem:[%s839] sm:$0xff]
        %v841 = vld [vmem:[%s839 + $0x8] sm:$0xff]
        %v842 = vld [vmem:[%s839 + $0x10] sm:$0xff]
        %v843 = vld [vmem:[%s839 + $0x18] sm:$0xff]
        %v844 = vld [vmem:[%s839 + $0x20] sm:$0xff]
        %v845 = vld [vmem:[%s839 + $0x28] sm:$0xff]
        %v846 = vld [vmem:[%s839 + $0x30] sm:$0xff]
        %v847 = vld [vmem:[%s839 + $0x38] sm:$0xff]
        %v848 = vld [vmem:[%s1] sm:$0xff]
        %v849 = vld [vmem:[%s1 + $0x8] sm:$0xff]
        %v850 = vld [vmem:[%s1 + $0x10] sm:$0xff]
        %v851 = vld [vmem:[%s1 + $0x18] sm:$0xff]
        %v852 = vld [vmem:[%s2] sm:$0x1]
        %v854 = vlaneseq
        %v855 = vshrl.u32 %v854, 7
        %v856 = vsub.s32 0, %v855
        %v857 = vrot.slane %v852, %v856
        %vm859 = vcmask 261120
        %v861 = vsel %vm859, %v840, 0
        %v864 = vsel %vm859, %v841, 0
        %v867 = vsel %vm859, %v842, 0
        %v870 = vsel %vm859, %v843, 0
        %v873 = vsel %vm859, %v844, 0
        %v876 = vsel %vm859, %v845, 0
        %v879 = vsel %vm859, %v846, 0
        %v882 = vsel %vm859, %v847, 0
        %884 = vmatprep.subr.mxu0 0.0
        %885 = vmatpush1.msra.mxu0 0.0
        %886 = vmatprep.subr.mxu0 0.0
        %887 = vmatpush1.msra.mxu0 0.0
        %888 = vmatprep.subr.mxu0 0.0
        %889 = vmatpush1.msra.mxu0 0.0
        %890 = vmatprep.subr.mxu0 0.0
        %891 = vmatpush1.msra.mxu0 0.0
        %892 = vmatprep.subr.mxu0 0.0
        %893 = vmatpush1.msra.mxu0 0.0
        %894 = vmatprep.subr.mxu0 0.0
        %895 = vmatpush1.msra.mxu0 0.0
        %896 = vmatprep.subr.mxu0 0.0
        %897 = vmatpush1.msra.mxu0 0.0
        %898 = vmatprep.subr.mxu0 0.0
        %899 = vmatpush1.msra.mxu0 0.0
        %900 = vmatprep.subr.mxu0 0.0
        %901 = vmatpush1.msra.mxu0 0.0
        %902 = vmatprep.subr.mxu0 0.0
        %903 = vmatpush1.msra.mxu0 0.0
        %904 = vmatprep.subr.mxu0 0.0
        %905 = vmatpush1.msra.mxu0 0.0
        %906 = vmatprep.subr.mxu0 0.0
        %907 = vmatpush1.msra.mxu0 0.0
        %908 = vmatprep.subr.mxu0 0.0
        %909 = vmatpush1.msra.mxu0 %v851
        %910 = vmatprep.subr.mxu0 0.0
        %911 = vmatpush1.msra.mxu0 %v850
        %912 = vmatprep.subr.mxu0 0.0
        %913 = vmatpush1.msra.mxu0 %v849
        %914 = vmatprep.subr.mxu0 0.0
        %915 = vmatpush1.msra.mxu0 %v848
        %916 = vmatprep.subr.mxu0 0.0
        %917 = vmatpush2.msra.mxu0 0.0
        %918 = vmatprep.subr.mxu0 0.0
        %919 = vmatpush2.msra.mxu0 0.0
        %920 = vmatprep.subr.mxu0 0.0
        %921 = vmatpush2.msra.mxu0 0.0
        %922 = vmatprep.subr.mxu0 0.0
        %923 = vmatpush2.msra.mxu0 0.0
        %924 = vmatprep.subr.mxu0 0.0
        %925 = vmatpush2.msra.mxu0 0.0
        %926 = vmatprep.subr.mxu0 0.0
        %927 = vmatpush2.msra.mxu0 0.0
        %928 = vmatprep.subr.mxu0 0.0
        %929 = vmatpush2.msra.mxu0 0.0
        %930 = vmatprep.subr.mxu0 0.0
        %931 = vmatpush2.msra.mxu0 0.0
        %932 = vmatprep.subr.mxu0 0.0
        %933 = vmatpush2.msra.mxu0 0.0
        %934 = vmatprep.subr.mxu0 0.0
        %935 = vmatpush2.msra.mxu0 0.0
        %936 = vmatprep.subr.mxu0 0.0
        %937 = vmatpush2.msra.mxu0 0.0
        %938 = vmatprep.subr.mxu0 0.0
        %939 = vmatpush2.msra.mxu0 0.0
        %940 = vmatprep.subr.mxu0 0.0
        %941 = vmatpush2.msra.mxu0 0.0
        %942 = vmatprep.subr.mxu0 0.0
        %943 = vmatpush2.msra.mxu0 0.0
        %944 = vmatprep.subr.mxu0 0.0
        %945 = vmatpush2.msra.mxu0 0.0
        %946 = vmatprep.subr.mxu0 0.0
        %947 = vmatpush2.msra.mxu0 0.0
        %948 = vmatprep.mubr.f32.mxu0 0.0
        %949 = vmatmul.mubr.f32.gmra.mxu0 %v861
        %v950 = vpop.f32.mrf.mxu0
        %v951 = vadd.f32 %v857, %v950
        %v952 = vpop.f32.mrf.mxu0
        %953 = vmatprep.mubr.f32.mxu0 0.0
        %954 = vmatmul.mubr.f32.gmra.mxu0 %v864
        %v955 = vpop.f32.mrf.mxu0
        %v956 = vadd.f32 %v857, %v955
        %v957 = vpop.f32.mrf.mxu0
        %958 = vmatprep.mubr.f32.mxu0 0.0
        %959 = vmatmul.mubr.f32.gmra.mxu0 %v867
        %v960 = vpop.f32.mrf.mxu0
        %v961 = vadd.f32 %v857, %v960
        %v962 = vpop.f32.mrf.mxu0
        %963 = vmatprep.mubr.f32.mxu0 0.0
        %964 = vmatmul.mubr.f32.gmra.mxu0 %v870
        %v965 = vpop.f32.mrf.mxu0
        %v966 = vadd.f32 %v857, %v965
        %v967 = vpop.f32.mrf.mxu0
        %968 = vmatprep.mubr.f32.mxu0 0.0
        %969 = vmatmul.mubr.f32.gmra.mxu0 %v873
        %v970 = vpop.f32.mrf.mxu0
        %v971 = vadd.f32 %v857, %v970
        %v972 = vpop.f32.mrf.mxu0
        %973 = vmatprep.mubr.f32.mxu0 0.0
        %974 = vmatmul.mubr.f32.gmra.mxu0 %v876
        %v975 = vpop.f32.mrf.mxu0
        %v976 = vadd.f32 %v857, %v975
        %v977 = vpop.f32.mrf.mxu0
        %978 = vmatprep.mubr.f32.mxu0 0.0
        %979 = vmatmul.mubr.f32.gmra.mxu0 %v879
        %v980 = vpop.f32.mrf.mxu0
        %v981 = vadd.f32 %v857, %v980
        %v982 = vpop.f32.mrf.mxu0
        %983 = vmatprep.mubr.f32.mxu0 0.0
        %984 = vmatmul.mubr.f32.gmra.mxu0 %v882
        %v985 = vpop.f32.mrf.mxu0
        %v986 = vadd.f32 %v857, %v985
        %v987 = vpop.f32.mrf.mxu0
        %988 = vdwg.mxu0
        %v989 = vmax.f32 %v951, 0.0
        %v990 = vmax.f32 %v956, 0.0
        %v991 = vmax.f32 %v961, 0.0
        %v992 = vmax.f32 %v966, 0.0
        %v993 = vmax.f32 %v971, 0.0
        %v994 = vmax.f32 %v976, 0.0
        %v995 = vmax.f32 %v981, 0.0
        %v996 = vmax.f32 %v986, 0.0
        %v997 = vld [vmem:[%s3] sm:$0xff]
        %v998 = vld [vmem:[%s3 + $0x8] sm:$0xff]
        %v999 = vld [vmem:[%s3 + $0x10] sm:$0xff]
        %v1000 = vld [vmem:[%s3 + $0x18] sm:$0xff]
        %v1001 = vld [vmem:[%s3 + $0x20] sm:$0xff]
        %v1002 = vld [vmem:[%s3 + $0x28] sm:$0xff]
        %v1003 = vld [vmem:[%s3 + $0x30] sm:$0xff]
        %v1004 = vld [vmem:[%s3 + $0x38] sm:$0xff]
        %v1005 = vld [vmem:[#allocation3] sm:$0x1]
        %v1007 = vlaneseq
        %v1008 = vshrl.u32 %v1007, 7
        %v1009 = vsub.s32 0, %v1008
        %v1010 = vrot.slane %v1005, %v1009
        %vm1012 = vcmask 523264
        %v1014 = vsel %vm1012, %v989, 0
        %v1017 = vsel %vm1012, %v990, 0
        %v1020 = vsel %vm1012, %v991, 0
        %v1023 = vsel %vm1012, %v992, 0
        %v1026 = vsel %vm1012, %v993, 0
        %v1029 = vsel %vm1012, %v994, 0
        %v1032 = vsel %vm1012, %v995, 0
        %v1035 = vsel %vm1012, %v996, 0
        %1037 = vmatprep.subr.mxu0 0.0
        %1038 = vmatpush1.msra.mxu0 0.0
        %1039 = vmatprep.subr.mxu0 0.0
        %1040 = vmatpush1.msra.mxu0 0.0
        %1041 = vmatprep.subr.mxu0 0.0
        %1042 = vmatpush1.msra.mxu0 0.0
        %1043 = vmatprep.subr.mxu0 0.0
        %1044 = vmatpush1.msra.mxu0 0.0
        %1045 = vmatprep.subr.mxu0 0.0
        %1046 = vmatpush1.msra.mxu0 0.0
        %1047 = vmatprep.subr.mxu0 0.0
        %1048 = vmatpush1.msra.mxu0 0.0
        %1049 = vmatprep.subr.mxu0 0.0
        %1050 = vmatpush1.msra.mxu0 0.0
        %1051 = vmatprep.subr.mxu0 0.0
        %1052 = vmatpush1.msra.mxu0 0.0
        %1053 = vmatprep.subr.mxu0 0.0
        %1054 = vmatpush1.msra.mxu0 %v1004
        %1055 = vmatprep.subr.mxu0 0.0
        %1056 = vmatpush1.msra.mxu0 %v1003
        %1057 = vmatprep.subr.mxu0 0.0
        %1058 = vmatpush1.msra.mxu0 %v1002
        %1059 = vmatprep.subr.mxu0 0.0
        %1060 = vmatpush1.msra.mxu0 %v1001
        %1061 = vmatprep.subr.mxu0 0.0
        %1062 = vmatpush1.msra.mxu0 %v1000
        %1063 = vmatprep.subr.mxu0 0.0
        %1064 = vmatpush1.msra.mxu0 %v999
        %1065 = vmatprep.subr.mxu0 0.0
        %1066 = vmatpush1.msra.mxu0 %v998
        %1067 = vmatprep.subr.mxu0 0.0
        %1068 = vmatpush1.msra.mxu0 %v997
        %1069 = vmatprep.subr.mxu0 0.0
        %1070 = vmatpush2.msra.mxu0 0.0
        %1071 = vmatprep.subr.mxu0 0.0
        %1072 = vmatpush2.msra.mxu0 0.0
        %1073 = vmatprep.subr.mxu0 0.0
        %1074 = vmatpush2.msra.mxu0 0.0
        %1075 = vmatprep.subr.mxu0 0.0
        %1076 = vmatpush2.msra.mxu0 0.0
        %1077 = vmatprep.subr.mxu0 0.0
        %1078 = vmatpush2.msra.mxu0 0.0
        %1079 = vmatprep.subr.mxu0 0.0
        %1080 = vmatpush2.msra.mxu0 0.0
        %1081 = vmatprep.subr.mxu0 0.0
        %1082 = vmatpush2.msra.mxu0 0.0
        %1083 = vmatprep.subr.mxu0 0.0
        %1084 = vmatpush2.msra.mxu0 0.0
        %1085 = vmatprep.subr.mxu0 0.0
        %1086 = vmatpush2.msra.mxu0 0.0
        %1087 = vmatprep.subr.mxu0 0.0
        %1088 = vmatpush2.msra.mxu0 0.0
        %1089 = vmatprep.subr.mxu0 0.0
        %1090 = vmatpush2.msra.mxu0 0.0
        %1091 = vmatprep.subr.mxu0 0.0
        %1092 = vmatpush2.msra.mxu0 0.0
        %1093 = vmatprep.subr.mxu0 0.0
        %1094 = vmatpush2.msra.mxu0 0.0
        %1095 = vmatprep.subr.mxu0 0.0
        %1096 = vmatpush2.msra.mxu0 0.0
        %1097 = vmatprep.subr.mxu0 0.0
        %1098 = vmatpush2.msra.mxu0 0.0
        %1099 = vmatprep.subr.mxu0 0.0
        %1100 = vmatpush2.msra.mxu0 0.0
        %1101 = vmatprep.mubr.f32.mxu0 0.0
        %1102 = vmatmul.mubr.f32.gmra.mxu0 %v1014
        %v1103 = vpop.f32.mrf.mxu0
        %v1104 = vadd.f32 %v1010, %v1103
        %v1105 = vpop.f32.mrf.mxu0
        %1106 = vmatprep.mubr.f32.mxu0 0.0
        %1107 = vmatmul.mubr.f32.gmra.mxu0 %v1017
        %v1108 = vpop.f32.mrf.mxu0
        %v1109 = vadd.f32 %v1010, %v1108
        %v1110 = vpop.f32.mrf.mxu0
        %1111 = vmatprep.mubr.f32.mxu0 0.0
        %1112 = vmatmul.mubr.f32.gmra.mxu0 %v1020
        %v1113 = vpop.f32.mrf.mxu0
        %v1114 = vadd.f32 %v1010, %v1113
        %v1115 = vpop.f32.mrf.mxu0
        %1116 = vmatprep.mubr.f32.mxu0 0.0
        %1117 = vmatmul.mubr.f32.gmra.mxu0 %v1023
        %v1118 = vpop.f32.mrf.mxu0
        %v1119 = vadd.f32 %v1010, %v1118
        %v1120 = vpop.f32.mrf.mxu0
        %1121 = vmatprep.mubr.f32.mxu0 0.0
        %1122 = vmatmul.mubr.f32.gmra.mxu0 %v1026
        %v1123 = vpop.f32.mrf.mxu0
        %v1124 = vadd.f32 %v1010, %v1123
        %v1125 = vpop.f32.mrf.mxu0
        %1126 = vmatprep.mubr.f32.mxu0 0.0
        %1127 = vmatmul.mubr.f32.gmra.mxu0 %v1029
        %v1128 = vpop.f32.mrf.mxu0
        %v1129 = vadd.f32 %v1010, %v1128
        %v1130 = vpop.f32.mrf.mxu0
        %1131 = vmatprep.mubr.f32.mxu0 0.0
        %1132 = vmatmul.mubr.f32.gmra.mxu0 %v1032
        %v1133 = vpop.f32.mrf.mxu0
        %v1134 = vadd.f32 %v1010, %v1133
        %v1135 = vpop.f32.mrf.mxu0
        %1136 = vmatprep.mubr.f32.mxu0 0.0
        %1137 = vmatmul.mubr.f32.gmra.mxu0 %v1035
        %v1138 = vpop.f32.mrf.mxu0
        %v1139 = vadd.f32 %v1010, %v1138
        %v1140 = vpop.f32.mrf.mxu0
        %1141 = vdwg.mxu0
        %v1142 = vmax.f32 %v1104, 0.0
        %v1143 = vmax.f32 %v1109, 0.0
        %v1144 = vmax.f32 %v1114, 0.0
        %v1145 = vmax.f32 %v1119, 0.0
        %v1146 = vmax.f32 %v1124, 0.0
        %v1147 = vmax.f32 %v1129, 0.0
        %v1148 = vmax.f32 %v1134, 0.0
        %v1149 = vmax.f32 %v1139, 0.0
        %v1150 = vld [vmem:[%s5] sm:$0xff]
        %v1151 = vld [vmem:[%s5 + $0x8] sm:$0xff]
        %v1152 = vld [vmem:[%s5 + $0x10] sm:$0xff]
        %v1153 = vld [vmem:[%s5 + $0x18] sm:$0xff]
        %v1154 = vld [vmem:[%s5 + $0x20] sm:$0xff]
        %v1155 = vld [vmem:[%s5 + $0x28] sm:$0xff]
        %v1156 = vld [vmem:[%s5 + $0x30] sm:$0xff]
        %v1157 = vld [vmem:[%s5 + $0x38] sm:$0xff]
        %v1158 = vld [vmem:[#allocation6] sm:$0x1]
        %v1160 = vlaneseq
        %v1161 = vshrl.u32 %v1160, 7
        %v1162 = vsub.s32 0, %v1161
        %v1163 = vrot.slane %v1158, %v1162
        %v1166 = vsel %vm1012, %v1142, 0
        %v1169 = vsel %vm1012, %v1143, 0
        %v1172 = vsel %vm1012, %v1144, 0
        %v1175 = vsel %vm1012, %v1145, 0
        %v1178 = vsel %vm1012, %v1146, 0
        %v1181 = vsel %vm1012, %v1147, 0
        %v1184 = vsel %vm1012, %v1148, 0
        %v1187 = vsel %vm1012, %v1149, 0
        %1189 = vmatprep.subr.mxu0 0.0
        %1190 = vmatpush1.msra.mxu0 0.0
        %1191 = vmatprep.subr.mxu0 0.0
        %1192 = vmatpush1.msra.mxu0 0.0
        %1193 = vmatprep.subr.mxu0 0.0
        %1194 = vmatpush1.msra.mxu0 0.0
        %1195 = vmatprep.subr.mxu0 0.0
        %1196 = vmatpush1.msra.mxu0 0.0
        %1197 = vmatprep.subr.mxu0 0.0
        %1198 = vmatpush1.msra.mxu0 0.0
        %1199 = vmatprep.subr.mxu0 0.0
        %1200 = vmatpush1.msra.mxu0 0.0
        %1201 = vmatprep.subr.mxu0 0.0
        %1202 = vmatpush1.msra.mxu0 0.0
        %1203 = vmatprep.subr.mxu0 0.0
        %1204 = vmatpush1.msra.mxu0 0.0
        %1205 = vmatprep.subr.mxu0 0.0
        %1206 = vmatpush1.msra.mxu0 %v1157
        %1207 = vmatprep.subr.mxu0 0.0
        %1208 = vmatpush1.msra.mxu0 %v1156
        %1209 = vmatprep.subr.mxu0 0.0
        %1210 = vmatpush1.msra.mxu0 %v1155
        %1211 = vmatprep.subr.mxu0 0.0
        %1212 = vmatpush1.msra.mxu0 %v1154
        %1213 = vmatprep.subr.mxu0 0.0
        %1214 = vmatpush1.msra.mxu0 %v1153
        %1215 = vmatprep.subr.mxu0 0.0
        %1216 = vmatpush1.msra.mxu0 %v1152
        %1217 = vmatprep.subr.mxu0 0.0
        %1218 = vmatpush1.msra.mxu0 %v1151
        %1219 = vmatprep.subr.mxu0 0.0
        %1220 = vmatpush1.msra.mxu0 %v1150
        %1221 = vmatprep.subr.mxu0 0.0
        %1222 = vmatpush2.msra.mxu0 0.0
        %1223 = vmatprep.subr.mxu0 0.0
        %1224 = vmatpush2.msra.mxu0 0.0
        %1225 = vmatprep.subr.mxu0 0.0
        %1226 = vmatpush2.msra.mxu0 0.0
        %1227 = vmatprep.subr.mxu0 0.0
        %1228 = vmatpush2.msra.mxu0 0.0
        %1229 = vmatprep.subr.mxu0 0.0
        %1230 = vmatpush2.msra.mxu0 0.0
        %1231 = vmatprep.subr.mxu0 0.0
        %1232 = vmatpush2.msra.mxu0 0.0
        %1233 = vmatprep.subr.mxu0 0.0
        %1234 = vmatpush2.msra.mxu0 0.0
        %1235 = vmatprep.subr.mxu0 0.0
        %1236 = vmatpush2.msra.mxu0 0.0
        %1237 = vmatprep.subr.mxu0 0.0
        %1238 = vmatpush2.msra.mxu0 0.0
        %1239 = vmatprep.subr.mxu0 0.0
        %1240 = vmatpush2.msra.mxu0 0.0
        %1241 = vmatprep.subr.mxu0 0.0
        %1242 = vmatpush2.msra.mxu0 0.0
        %1243 = vmatprep.subr.mxu0 0.0
        %1244 = vmatpush2.msra.mxu0 0.0
        %1245 = vmatprep.subr.mxu0 0.0
        %1246 = vmatpush2.msra.mxu0 0.0
        %1247 = vmatprep.subr.mxu0 0.0
        %1248 = vmatpush2.msra.mxu0 0.0
        %1249 = vmatprep.subr.mxu0 0.0
        %1250 = vmatpush2.msra.mxu0 0.0
        %1251 = vmatprep.subr.mxu0 0.0
        %1252 = vmatpush2.msra.mxu0 0.0
        %1253 = vmatprep.mubr.f32.mxu0 0.0
        %1254 = vmatmul.mubr.f32.gmra.mxu0 %v1166
        %v1255 = vpop.f32.mrf.mxu0
        %v1256 = vadd.f32 %v1163, %v1255
        %v1257 = vpop.f32.mrf.mxu0
        %1258 = vmatprep.mubr.f32.mxu0 0.0
        %1259 = vmatmul.mubr.f32.gmra.mxu0 %v1169
        %v1260 = vpop.f32.mrf.mxu0
        %v1261 = vadd.f32 %v1163, %v1260
        %v1262 = vpop.f32.mrf.mxu0
        %1263 = vmatprep.mubr.f32.mxu0 0.0
        %1264 = vmatmul.mubr.f32.gmra.mxu0 %v1172
        %v1265 = vpop.f32.mrf.mxu0
        %v1266 = vadd.f32 %v1163, %v1265
        %v1267 = vpop.f32.mrf.mxu0
        %1268 = vmatprep.mubr.f32.mxu0 0.0
        %1269 = vmatmul.mubr.f32.gmra.mxu0 %v1175
        %v1270 = vpop.f32.mrf.mxu0
        %v1271 = vadd.f32 %v1163, %v1270
        %v1272 = vpop.f32.mrf.mxu0
        %1273 = vmatprep.mubr.f32.mxu0 0.0
        %1274 = vmatmul.mubr.f32.gmra.mxu0 %v1178
        %v1275 = vpop.f32.mrf.mxu0
        %v1276 = vadd.f32 %v1163, %v1275
        %v1277 = vpop.f32.mrf.mxu0
        %1278 = vmatprep.mubr.f32.mxu0 0.0
        %1279 = vmatmul.mubr.f32.gmra.mxu0 %v1181
        %v1280 = vpop.f32.mrf.mxu0
        %v1281 = vadd.f32 %v1163, %v1280
        %v1282 = vpop.f32.mrf.mxu0
        %1283 = vmatprep.mubr.f32.mxu0 0.0
        %1284 = vmatmul.mubr.f32.gmra.mxu0 %v1184
        %v1285 = vpop.f32.mrf.mxu0
        %v1286 = vadd.f32 %v1163, %v1285
        %v1287 = vpop.f32.mrf.mxu0
        %1288 = vmatprep.mubr.f32.mxu0 0.0
        %1289 = vmatmul.mubr.f32.gmra.mxu0 %v1187
        %v1290 = vpop.f32.mrf.mxu0
        %v1291 = vadd.f32 %v1163, %v1290
        %v1292 = vpop.f32.mrf.mxu0
        %1293 = vdwg.mxu0
        %v1294 = vmax.f32 %v1256, 0.0
        %v1295 = vmax.f32 %v1261, 0.0
        %v1296 = vmax.f32 %v1266, 0.0
        %v1297 = vmax.f32 %v1271, 0.0
        %v1298 = vmax.f32 %v1276, 0.0
        %v1299 = vmax.f32 %v1281, 0.0
        %v1300 = vmax.f32 %v1286, 0.0
        %v1301 = vmax.f32 %v1291, 0.0
        %v1302 = vld [vmem:[%s7] sm:$0xff]
        %v1303 = vld [vmem:[%s7 + $0x8] sm:$0xff]
        %v1304 = vld [vmem:[%s7 + $0x10] sm:$0xff]
        %v1305 = vld [vmem:[%s7 + $0x18] sm:$0xff]
        %v1306 = vld [vmem:[#allocation8] sm:$0x1]
        %v1308 = vlaneseq
        %v1309 = vshrl.u32 %v1308, 7
        %v1310 = vsub.s32 0, %v1309
        %v1311 = vrot.slane %v1306, %v1310
        %v1314 = vsel %vm859, %v1294, 0
        %v1317 = vsel %vm859, %v1295, 0
        %v1320 = vsel %vm859, %v1296, 0
        %v1323 = vsel %vm859, %v1297, 0
        %v1326 = vsel %vm859, %v1298, 0
        %v1329 = vsel %vm859, %v1299, 0
        %v1332 = vsel %vm859, %v1300, 0
        %v1335 = vsel %vm859, %v1301, 0
        %1337 = vmatprep.subr.mxu0 0.0
        %1338 = vmatpush1.msra.mxu0 0.0
        %1339 = vmatprep.subr.mxu0 0.0
        %1340 = vmatpush1.msra.mxu0 0.0
        %1341 = vmatprep.subr.mxu0 0.0
        %1342 = vmatpush1.msra.mxu0 0.0
        %1343 = vmatprep.subr.mxu0 0.0
        %1344 = vmatpush1.msra.mxu0 0.0
        %1345 = vmatprep.subr.mxu0 0.0
        %1346 = vmatpush1.msra.mxu0 0.0
        %1347 = vmatprep.subr.mxu0 0.0
        %1348 = vmatpush1.msra.mxu0 0.0
        %1349 = vmatprep.subr.mxu0 0.0
        %1350 = vmatpush1.msra.mxu0 0.0
        %1351 = vmatprep.subr.mxu0 0.0
        %1352 = vmatpush1.msra.mxu0 0.0
        %1353 = vmatprep.subr.mxu0 0.0
        %1354 = vmatpush1.msra.mxu0 0.0
        %1355 = vmatprep.subr.mxu0 0.0
        %1356 = vmatpush1.msra.mxu0 0.0
        %1357 = vmatprep.subr.mxu0 0.0
        %1358 = vmatpush1.msra.mxu0 0.0
        %1359 = vmatprep.subr.mxu0 0.0
        %1360 = vmatpush1.msra.mxu0 0.0
        %1361 = vmatprep.subr.mxu0 0.0
        %1362 = vmatpush1.msra.mxu0 %v1305
        %1363 = vmatprep.subr.mxu0 0.0
        %1364 = vmatpush1.msra.mxu0 %v1304
        %1365 = vmatprep.subr.mxu0 0.0
        %1366 = vmatpush1.msra.mxu0 %v1303
        %1367 = vmatprep.subr.mxu0 0.0
        %1368 = vmatpush1.msra.mxu0 %v1302
        %1369 = vmatprep.subr.mxu0 0.0
        %1370 = vmatpush2.msra.mxu0 0.0
        %1371 = vmatprep.subr.mxu0 0.0
        %1372 = vmatpush2.msra.mxu0 0.0
        %1373 = vmatprep.subr.mxu0 0.0
        %1374 = vmatpush2.msra.mxu0 0.0
        %1375 = vmatprep.subr.mxu0 0.0
        %1376 = vmatpush2.msra.mxu0 0.0
        %1377 = vmatprep.subr.mxu0 0.0
        %1378 = vmatpush2.msra.mxu0 0.0
        %1379 = vmatprep.subr.mxu0 0.0
        %1380 = vmatpush2.msra.mxu0 0.0
        %1381 = vmatprep.subr.mxu0 0.0
        %1382 = vmatpush2.msra.mxu0 0.0
        %1383 = vmatprep.subr.mxu0 0.0
        %1384 = vmatpush2.msra.mxu0 0.0
        %1385 = vmatprep.subr.mxu0 0.0
        %1386 = vmatpush2.msra.mxu0 0.0
        %1387 = vmatprep.subr.mxu0 0.0
        %1388 = vmatpush2.msra.mxu0 0.0
        %1389 = vmatprep.subr.mxu0 0.0
        %1390 = vmatpush2.msra.mxu0 0.0
        %1391 = vmatprep.subr.mxu0 0.0
        %1392 = vmatpush2.msra.mxu0 0.0
        %1393 = vmatprep.subr.mxu0 0.0
        %1394 = vmatpush2.msra.mxu0 0.0
        %1395 = vmatprep.subr.mxu0 0.0
        %1396 = vmatpush2.msra.mxu0 0.0
        %1397 = vmatprep.subr.mxu0 0.0
        %1398 = vmatpush2.msra.mxu0 0.0
        %1399 = vmatprep.subr.mxu0 0.0
        %1400 = vmatpush2.msra.mxu0 0.0
        %1401 = vmatprep.mubr.f32.mxu0 0.0
        %1402 = vmatmul.mubr.f32.gmra.mxu0 %v1314
        %v1403 = vpop.f32.mrf.mxu0
        %v1404 = vadd.f32 %v1311, %v1403
        %v1405 = vpop.f32.mrf.mxu0
        %1406 = vmatprep.mubr.f32.mxu0 0.0
        %1407 = vmatmul.mubr.f32.gmra.mxu0 %v1317
        %v1408 = vpop.f32.mrf.mxu0
        %v1409 = vadd.f32 %v1311, %v1408
        %v1410 = vpop.f32.mrf.mxu0
        %1411 = vmatprep.mubr.f32.mxu0 0.0
        %1412 = vmatmul.mubr.f32.gmra.mxu0 %v1320
        %v1413 = vpop.f32.mrf.mxu0
        %v1414 = vadd.f32 %v1311, %v1413
        %v1415 = vpop.f32.mrf.mxu0
        %1416 = vmatprep.mubr.f32.mxu0 0.0
        %1417 = vmatmul.mubr.f32.gmra.mxu0 %v1323
        %v1418 = vpop.f32.mrf.mxu0
        %v1419 = vadd.f32 %v1311, %v1418
        %v1420 = vpop.f32.mrf.mxu0
        %1421 = vmatprep.mubr.f32.mxu0 0.0
        %1422 = vmatmul.mubr.f32.gmra.mxu0 %v1326
        %v1423 = vpop.f32.mrf.mxu0
        %v1424 = vadd.f32 %v1311, %v1423
        %v1425 = vpop.f32.mrf.mxu0
        %1426 = vmatprep.mubr.f32.mxu0 0.0
        %1427 = vmatmul.mubr.f32.gmra.mxu0 %v1329
        %v1428 = vpop.f32.mrf.mxu0
        %v1429 = vadd.f32 %v1311, %v1428
        %v1430 = vpop.f32.mrf.mxu0
        %1431 = vmatprep.mubr.f32.mxu0 0.0
        %1432 = vmatmul.mubr.f32.gmra.mxu0 %v1332
        %v1433 = vpop.f32.mrf.mxu0
        %v1434 = vadd.f32 %v1311, %v1433
        %v1435 = vpop.f32.mrf.mxu0
        %1436 = vmatprep.mubr.f32.mxu0 0.0
        %1437 = vmatmul.mubr.f32.gmra.mxu0 %v1335
        %v1438 = vpop.f32.mrf.mxu0
        %v1439 = vadd.f32 %v1311, %v1438
        %v1440 = vpop.f32.mrf.mxu0
        %1441 = vdwg.mxu0
        %v1442 = vmax.f32 %v1404, 0.0
        %v1443 = vmax.f32 %v1409, 0.0
        %v1444 = vmax.f32 %v1414, 0.0
        %v1445 = vmax.f32 %v1419, 0.0
        %v1446 = vmax.f32 %v1424, 0.0
        %v1447 = vmax.f32 %v1429, 0.0
        %v1448 = vmax.f32 %v1434, 0.0
        %v1449 = vmax.f32 %v1439, 0.0
        %v1450 = vld [vmem:[%s9] sm:$0xff]
        %v1451 = vld [vmem:[%s9 + $0x8] sm:$0xff]
        %v1452 = vld [vmem:[%s9 + $0x10] sm:$0xff]
        %v1453 = vld [vmem:[%s9 + $0x18] sm:$0xff]
        %v1454 = vld [vmem:[#allocation9] sm:$0x1]
        %v1456 = vlaneseq
        %v1457 = vshrl.u32 %v1456, 7
        %v1458 = vsub.s32 0, %v1457
        %v1459 = vrot.slane %v1454, %v1458
        %v1462 = vsel %vm859, %v1442, 0
        %v1465 = vsel %vm859, %v1443, 0
        %v1468 = vsel %vm859, %v1444, 0
        %v1471 = vsel %vm859, %v1445, 0
        %v1474 = vsel %vm859, %v1446, 0
        %v1477 = vsel %vm859, %v1447, 0
        %v1480 = vsel %vm859, %v1448, 0
        %v1483 = vsel %vm859, %v1449, 0
        %1485 = vmatprep.subr.mxu0 0.0
        %1486 = vmatpush1.msra.mxu0 0.0
        %1487 = vmatprep.subr.mxu0 0.0
        %1488 = vmatpush1.msra.mxu0 0.0
        %1489 = vmatprep.subr.mxu0 0.0
        %1490 = vmatpush1.msra.mxu0 0.0
        %1491 = vmatprep.subr.mxu0 0.0
        %1492 = vmatpush1.msra.mxu0 0.0
        %1493 = vmatprep.subr.mxu0 0.0
        %1494 = vmatpush1.msra.mxu0 0.0
        %1495 = vmatprep.subr.mxu0 0.0
        %1496 = vmatpush1.msra.mxu0 0.0
        %1497 = vmatprep.subr.mxu0 0.0
        %1498 = vmatpush1.msra.mxu0 0.0
        %1499 = vmatprep.subr.mxu0 0.0
        %1500 = vmatpush1.msra.mxu0 0.0
        %1501 = vmatprep.subr.mxu0 0.0
        %1502 = vmatpush1.msra.mxu0 0.0
        %1503 = vmatprep.subr.mxu0 0.0
        %1504 = vmatpush1.msra.mxu0 0.0
        %1505 = vmatprep.subr.mxu0 0.0
        %1506 = vmatpush1.msra.mxu0 0.0
        %1507 = vmatprep.subr.mxu0 0.0
        %1508 = vmatpush1.msra.mxu0 0.0
        %1509 = vmatprep.subr.mxu0 0.0
        %1510 = vmatpush1.msra.mxu0 %v1453
        %1511 = vmatprep.subr.mxu0 0.0
        %1512 = vmatpush1.msra.mxu0 %v1452
        %1513 = vmatprep.subr.mxu0 0.0
        %1514 = vmatpush1.msra.mxu0 %v1451
        %1515 = vmatprep.subr.mxu0 0.0
        %1516 = vmatpush1.msra.mxu0 %v1450
        %1517 = vmatprep.subr.mxu0 0.0
        %1518 = vmatpush2.msra.mxu0 0.0
        %1519 = vmatprep.subr.mxu0 0.0
        %1520 = vmatpush2.msra.mxu0 0.0
        %1521 = vmatprep.subr.mxu0 0.0
        %1522 = vmatpush2.msra.mxu0 0.0
        %1523 = vmatprep.subr.mxu0 0.0
        %1524 = vmatpush2.msra.mxu0 0.0
        %1525 = vmatprep.subr.mxu0 0.0
        %1526 = vmatpush2.msra.mxu0 0.0
        %1527 = vmatprep.subr.mxu0 0.0
        %1528 = vmatpush2.msra.mxu0 0.0
        %1529 = vmatprep.subr.mxu0 0.0
        %1530 = vmatpush2.msra.mxu0 0.0
        %1531 = vmatprep.subr.mxu0 0.0
        %1532 = vmatpush2.msra.mxu0 0.0
        %1533 = vmatprep.subr.mxu0 0.0
        %1534 = vmatpush2.msra.mxu0 0.0
        %1535 = vmatprep.subr.mxu0 0.0
        %1536 = vmatpush2.msra.mxu0 0.0
        %1537 = vmatprep.subr.mxu0 0.0
        %1538 = vmatpush2.msra.mxu0 0.0
        %1539 = vmatprep.subr.mxu0 0.0
        %1540 = vmatpush2.msra.mxu0 0.0
        %1541 = vmatprep.subr.mxu0 0.0
        %1542 = vmatpush2.msra.mxu0 0.0
        %1543 = vmatprep.subr.mxu0 0.0
        %1544 = vmatpush2.msra.mxu0 0.0
        %1545 = vmatprep.subr.mxu0 0.0
        %1546 = vmatpush2.msra.mxu0 0.0
        %1547 = vmatprep.subr.mxu0 0.0
        %1548 = vmatpush2.msra.mxu0 0.0
        %1549 = vmatprep.mubr.f32.mxu0 0.0
        %1550 = vmatmul.mubr.f32.gmra.mxu0 %v1462
        %v1551 = vpop.f32.mrf.mxu0
        %v1552 = vadd.f32 %v1459, %v1551
        %v1553 = vpop.f32.mrf.mxu0
        %1554 = vmatprep.mubr.f32.mxu0 0.0
        %1555 = vmatmul.mubr.f32.gmra.mxu0 %v1465
        %v1556 = vpop.f32.mrf.mxu0
        %v1557 = vadd.f32 %v1459, %v1556
        %v1558 = vpop.f32.mrf.mxu0
        %1559 = vmatprep.mubr.f32.mxu0 0.0
        %1560 = vmatmul.mubr.f32.gmra.mxu0 %v1468
        %v1561 = vpop.f32.mrf.mxu0
        %v1562 = vadd.f32 %v1459, %v1561
        %v1563 = vpop.f32.mrf.mxu0
        %1564 = vmatprep.mubr.f32.mxu0 0.0
        %1565 = vmatmul.mubr.f32.gmra.mxu0 %v1471
        %v1566 = vpop.f32.mrf.mxu0
        %v1567 = vadd.f32 %v1459, %v1566
        %v1568 = vpop.f32.mrf.mxu0
        %1569 = vmatprep.mubr.f32.mxu0 0.0
        %1570 = vmatmul.mubr.f32.gmra.mxu0 %v1474
        %v1571 = vpop.f32.mrf.mxu0
        %v1572 = vadd.f32 %v1459, %v1571
        %v1573 = vpop.f32.mrf.mxu0
        %1574 = vmatprep.mubr.f32.mxu0 0.0
        %1575 = vmatmul.mubr.f32.gmra.mxu0 %v1477
        %v1576 = vpop.f32.mrf.mxu0
        %v1577 = vadd.f32 %v1459, %v1576
        %v1578 = vpop.f32.mrf.mxu0
        %1579 = vmatprep.mubr.f32.mxu0 0.0
        %1580 = vmatmul.mubr.f32.gmra.mxu0 %v1480
        %v1581 = vpop.f32.mrf.mxu0
        %v1582 = vadd.f32 %v1459, %v1581
        %v1583 = vpop.f32.mrf.mxu0
        %1584 = vmatprep.mubr.f32.mxu0 0.0
        %1585 = vmatmul.mubr.f32.gmra.mxu0 %v1483
        %v1586 = vpop.f32.mrf.mxu0
        %v1587 = vadd.f32 %v1459, %v1586
        %v1588 = vpop.f32.mrf.mxu0
        %1589 = vdwg.mxu0
        %v1590 = vmax.f32 %v1552, 0.0
        %v1591 = vmax.f32 %v1557, 0.0
        %v1592 = vmax.f32 %v1562, 0.0
        %v1593 = vmax.f32 %v1567, 0.0
        %v1594 = vmax.f32 %v1572, 0.0
        %v1595 = vmax.f32 %v1577, 0.0
        %v1596 = vmax.f32 %v1582, 0.0
        %v1597 = vmax.f32 %v1587, 0.0
        %v1598 = vld [vmem:[%s11] sm:$0xff]
        %v1599 = vld [vmem:[%s11 + $0x8] sm:$0xff]
        %v1600 = vld [vmem:[%s11 + $0x10] sm:$0xff]
        %v1601 = vld [vmem:[%s11 + $0x18] sm:$0xff]
        %v1602 = vld [vmem:[#allocation11] sm:$0x1]
        %v1604 = vlaneseq
        %v1605 = vshrl.u32 %v1604, 7
        %v1606 = vsub.s32 0, %v1605
        %v1607 = vrot.slane %v1602, %v1606
        %v1610 = vsel %vm859, %v1590, 0
        %v1613 = vsel %vm859, %v1591, 0
        %v1616 = vsel %vm859, %v1592, 0
        %v1619 = vsel %vm859, %v1593, 0
        %v1622 = vsel %vm859, %v1594, 0
        %v1625 = vsel %vm859, %v1595, 0
        %v1628 = vsel %vm859, %v1596, 0
        %v1631 = vsel %vm859, %v1597, 0
        %1633 = vmatprep.subr.mxu0 0.0
        %1634 = vmatpush1.msra.mxu0 0.0
        %1635 = vmatprep.subr.mxu0 0.0
        %1636 = vmatpush1.msra.mxu0 0.0
        %1637 = vmatprep.subr.mxu0 0.0
        %1638 = vmatpush1.msra.mxu0 0.0
        %1639 = vmatprep.subr.mxu0 0.0
        %1640 = vmatpush1.msra.mxu0 0.0
        %1641 = vmatprep.subr.mxu0 0.0
        %1642 = vmatpush1.msra.mxu0 0.0
        %1643 = vmatprep.subr.mxu0 0.0
        %1644 = vmatpush1.msra.mxu0 0.0
        %1645 = vmatprep.subr.mxu0 0.0
        %1646 = vmatpush1.msra.mxu0 0.0
        %1647 = vmatprep.subr.mxu0 0.0
        %1648 = vmatpush1.msra.mxu0 0.0
        %1649 = vmatprep.subr.mxu0 0.0
        %1650 = vmatpush1.msra.mxu0 0.0
        %1651 = vmatprep.subr.mxu0 0.0
        %1652 = vmatpush1.msra.mxu0 0.0
        %1653 = vmatprep.subr.mxu0 0.0
        %1654 = vmatpush1.msra.mxu0 0.0
        %1655 = vmatprep.subr.mxu0 0.0
        %1656 = vmatpush1.msra.mxu0 0.0
        %1657 = vmatprep.subr.mxu0 0.0
        %1658 = vmatpush1.msra.mxu0 %v1601
        %1659 = vmatprep.subr.mxu0 0.0
        %1660 = vmatpush1.msra.mxu0 %v1600
        %1661 = vmatprep.subr.mxu0 0.0
        %1662 = vmatpush1.msra.mxu0 %v1599
        %1663 = vmatprep.subr.mxu0 0.0
        %1664 = vmatpush1.msra.mxu0 %v1598
        %1665 = vmatprep.subr.mxu0 0.0
        %1666 = vmatpush2.msra.mxu0 0.0
        %1667 = vmatprep.subr.mxu0 0.0
        %1668 = vmatpush2.msra.mxu0 0.0
        %1669 = vmatprep.subr.mxu0 0.0
        %1670 = vmatpush2.msra.mxu0 0.0
        %1671 = vmatprep.subr.mxu0 0.0
        %1672 = vmatpush2.msra.mxu0 0.0
        %1673 = vmatprep.subr.mxu0 0.0
        %1674 = vmatpush2.msra.mxu0 0.0
        %1675 = vmatprep.subr.mxu0 0.0
        %1676 = vmatpush2.msra.mxu0 0.0
        %1677 = vmatprep.subr.mxu0 0.0
        %1678 = vmatpush2.msra.mxu0 0.0
        %1679 = vmatprep.subr.mxu0 0.0
        %1680 = vmatpush2.msra.mxu0 0.0
        %1681 = vmatprep.subr.mxu0 0.0
        %1682 = vmatpush2.msra.mxu0 0.0
        %1683 = vmatprep.subr.mxu0 0.0
        %1684 = vmatpush2.msra.mxu0 0.0
        %1685 = vmatprep.subr.mxu0 0.0
        %1686 = vmatpush2.msra.mxu0 0.0
        %1687 = vmatprep.subr.mxu0 0.0
        %1688 = vmatpush2.msra.mxu0 0.0
        %1689 = vmatprep.subr.mxu0 0.0
        %1690 = vmatpush2.msra.mxu0 0.0
        %1691 = vmatprep.subr.mxu0 0.0
        %1692 = vmatpush2.msra.mxu0 0.0
        %1693 = vmatprep.subr.mxu0 0.0
        %1694 = vmatpush2.msra.mxu0 0.0
        %1695 = vmatprep.subr.mxu0 0.0
        %1696 = vmatpush2.msra.mxu0 0.0
        %1697 = vmatprep.mubr.f32.mxu0 0.0
        %1698 = vmatmul.mubr.f32.gmra.mxu0 %v1610
        %v1699 = vpop.f32.mrf.mxu0
        %v1700 = vadd.f32 %v1607, %v1699
        %v1701 = vpop.f32.mrf.mxu0
        %1702 = vmatprep.mubr.f32.mxu0 0.0
        %1703 = vmatmul.mubr.f32.gmra.mxu0 %v1613
        %v1704 = vpop.f32.mrf.mxu0
        %v1705 = vadd.f32 %v1607, %v1704
        %v1706 = vpop.f32.mrf.mxu0
        %1707 = vmatprep.mubr.f32.mxu0 0.0
        %1708 = vmatmul.mubr.f32.gmra.mxu0 %v1616
        %v1709 = vpop.f32.mrf.mxu0
        %v1710 = vadd.f32 %v1607, %v1709
        %v1711 = vpop.f32.mrf.mxu0
        %1712 = vmatprep.mubr.f32.mxu0 0.0
        %1713 = vmatmul.mubr.f32.gmra.mxu0 %v1619
        %v1714 = vpop.f32.mrf.mxu0
        %v1715 = vadd.f32 %v1607, %v1714
        %v1716 = vpop.f32.mrf.mxu0
        %1717 = vmatprep.mubr.f32.mxu0 0.0
        %1718 = vmatmul.mubr.f32.gmra.mxu0 %v1622
        %v1719 = vpop.f32.mrf.mxu0
        %v1720 = vadd.f32 %v1607, %v1719
        %v1721 = vpop.f32.mrf.mxu0
        %1722 = vmatprep.mubr.f32.mxu0 0.0
        %1723 = vmatmul.mubr.f32.gmra.mxu0 %v1625
        %v1724 = vpop.f32.mrf.mxu0
        %v1725 = vadd.f32 %v1607, %v1724
        %v1726 = vpop.f32.mrf.mxu0
        %1727 = vmatprep.mubr.f32.mxu0 0.0
        %1728 = vmatmul.mubr.f32.gmra.mxu0 %v1628
        %v1729 = vpop.f32.mrf.mxu0
        %v1730 = vadd.f32 %v1607, %v1729
        %v1731 = vpop.f32.mrf.mxu0
        %1732 = vmatprep.mubr.f32.mxu0 0.0
        %1733 = vmatmul.mubr.f32.gmra.mxu0 %v1631
        %v1734 = vpop.f32.mrf.mxu0
        %v1735 = vadd.f32 %v1607, %v1734
        %v1736 = vpop.f32.mrf.mxu0
        %1737 = vdwg.mxu0
        %v1738 = vmax.f32 %v1700, 0.0
        %v1739 = vmax.f32 %v1705, 0.0
        %v1740 = vmax.f32 %v1710, 0.0
        %v1741 = vmax.f32 %v1715, 0.0
        %v1742 = vmax.f32 %v1720, 0.0
        %v1743 = vmax.f32 %v1725, 0.0
        %v1744 = vmax.f32 %v1730, 0.0
        %v1745 = vmax.f32 %v1735, 0.0
        %v1746 = vsel %vm859, %v1738, 0.0
        %v1747 = vrot.slane %v1746, 4
        %v1748 = vadd.f32 %v1746, %v1747
        %v1749 = vrot.slane %v1748, 2
        %v1750 = vadd.f32 %v1748, %v1749
        %v1751 = vrot.slane %v1750, 1
        %v1752 = vadd.f32 %v1750, %v1751
        %v1753 = vsel %vm859, %v1739, 0.0
        %v1754 = vrot.slane %v1753, 4
        %v1755 = vadd.f32 %v1753, %v1754
        %v1756 = vrot.slane %v1755, 2
        %v1757 = vadd.f32 %v1755, %v1756
        %v1758 = vrot.slane %v1757, 1
        %v1759 = vadd.f32 %v1757, %v1758
        %v1760 = vsel %vm859, %v1740, 0.0
        %v1761 = vrot.slane %v1760, 4
        %v1762 = vadd.f32 %v1760, %v1761
        %v1763 = vrot.slane %v1762, 2
        %v1764 = vadd.f32 %v1762, %v1763
        %v1765 = vrot.slane %v1764, 1
        %v1766 = vadd.f32 %v1764, %v1765
        %v1767 = vsel %vm859, %v1741, 0.0
        %v1768 = vrot.slane %v1767, 4
        %v1769 = vadd.f32 %v1767, %v1768
        %v1770 = vrot.slane %v1769, 2
        %v1771 = vadd.f32 %v1769, %v1770
        %v1772 = vrot.slane %v1771, 1
        %v1773 = vadd.f32 %v1771, %v1772
        %v1774 = vsel %vm859, %v1742, 0.0
        %v1775 = vrot.slane %v1774, 4
        %v1776 = vadd.f32 %v1774, %v1775
        %v1777 = vrot.slane %v1776, 2
        %v1778 = vadd.f32 %v1776, %v1777
        %v1779 = vrot.slane %v1778, 1
        %v1780 = vadd.f32 %v1778, %v1779
        %v1781 = vsel %vm859, %v1743, 0.0
        %v1782 = vrot.slane %v1781, 4
        %v1783 = vadd.f32 %v1781, %v1782
        %v1784 = vrot.slane %v1783, 2
        %v1785 = vadd.f32 %v1783, %v1784
        %v1786 = vrot.slane %v1785, 1
        %v1787 = vadd.f32 %v1785, %v1786
        %v1788 = vsel %vm859, %v1744, 0.0
        %v1789 = vrot.slane %v1788, 4
        %v1790 = vadd.f32 %v1788, %v1789
        %v1791 = vrot.slane %v1790, 2
        %v1792 = vadd.f32 %v1790, %v1791
        %v1793 = vrot.slane %v1792, 1
        %v1794 = vadd.f32 %v1792, %v1793
        %v1795 = vsel %vm859, %v1745, 0.0
        %v1796 = vrot.slane %v1795, 4
        %v1797 = vadd.f32 %v1795, %v1796
        %v1798 = vrot.slane %v1797, 2
        %v1799 = vadd.f32 %v1797, %v1798
        %v1800 = vrot.slane %v1799, 1
        %v1801 = vadd.f32 %v1799, %v1800
        %v1802 = vld [vmem:[%s13] sm:$0xff]
        %v1803 = vld [vmem:[%s13 + $0x8] sm:$0xff]
        %v1804 = vld [vmem:[%s13 + $0x10] sm:$0xff]
        %v1805 = vld [vmem:[%s13 + $0x18] sm:$0xff]
        %v1806 = vld [vmem:[#allocation12] sm:$0x1]
        %v1808 = vlaneseq
        %v1809 = vshrl.u32 %v1808, 7
        %v1810 = vsub.s32 0, %v1809
        %v1811 = vrot.slane %v1806, %v1810
        %vm1821 = vcmask 1041409
        %v1822 = vsel %vm1821, %v1759, %v1752
        %vm1823 = vcmask 1042434
        %v1824 = vsel %vm1823, %v1766, %v1822
        %vm1825 = vcmask 1043459
        %v1826 = vsel %vm1825, %v1773, %v1824
        %vm1827 = vcmask 1044484
        %v1828 = vsel %vm1827, %v1780, %v1826
        %vm1829 = vcmask 1045509
        %v1830 = vsel %vm1829, %v1787, %v1828
        %vm1831 = vcmask 1046534
        %v1832 = vsel %vm1831, %v1794, %v1830
        %vm1833 = vcmask 1047559
        %v1834 = vsel %vm1833, %v1801, %v1832
        %v1835 = vsel %vm859, %v1834, 0
        %1837 = vmatprep.subr.mxu0 0.0
        %1838 = vmatpush1.msra.mxu0 0.0
        %1839 = vmatprep.subr.mxu0 0.0
        %1840 = vmatpush1.msra.mxu0 0.0
        %1841 = vmatprep.subr.mxu0 0.0
        %1842 = vmatpush1.msra.mxu0 0.0
        %1843 = vmatprep.subr.mxu0 0.0
        %1844 = vmatpush1.msra.mxu0 0.0
        %1845 = vmatprep.subr.mxu0 0.0
        %1846 = vmatpush1.msra.mxu0 0.0
        %1847 = vmatprep.subr.mxu0 0.0
        %1848 = vmatpush1.msra.mxu0 0.0
        %1849 = vmatprep.subr.mxu0 0.0
        %1850 = vmatpush1.msra.mxu0 0.0
        %1851 = vmatprep.subr.mxu0 0.0
        %1852 = vmatpush1.msra.mxu0 0.0
        %1853 = vmatprep.subr.mxu0 0.0
        %1854 = vmatpush1.msra.mxu0 0.0
        %1855 = vmatprep.subr.mxu0 0.0
        %1856 = vmatpush1.msra.mxu0 0.0
        %1857 = vmatprep.subr.mxu0 0.0
        %1858 = vmatpush1.msra.mxu0 0.0
        %1859 = vmatprep.subr.mxu0 0.0
        %1860 = vmatpush1.msra.mxu0 0.0
        %1861 = vmatprep.subr.mxu0 0.0
        %1862 = vmatpush1.msra.mxu0 %v1805
        %1863 = vmatprep.subr.mxu0 0.0
        %1864 = vmatpush1.msra.mxu0 %v1804
        %1865 = vmatprep.subr.mxu0 0.0
        %1866 = vmatpush1.msra.mxu0 %v1803
        %1867 = vmatprep.subr.mxu0 0.0
        %1868 = vmatpush1.msra.mxu0 %v1802
        %1869 = vmatprep.subr.mxu0 0.0
        %1870 = vmatpush2.msra.mxu0 0.0
        %1871 = vmatprep.subr.mxu0 0.0
        %1872 = vmatpush2.msra.mxu0 0.0
        %1873 = vmatprep.subr.mxu0 0.0
        %1874 = vmatpush2.msra.mxu0 0.0
        %1875 = vmatprep.subr.mxu0 0.0
        %1876 = vmatpush2.msra.mxu0 0.0
        %1877 = vmatprep.subr.mxu0 0.0
        %1878 = vmatpush2.msra.mxu0 0.0
        %1879 = vmatprep.subr.mxu0 0.0
        %1880 = vmatpush2.msra.mxu0 0.0
        %1881 = vmatprep.subr.mxu0 0.0
        %1882 = vmatpush2.msra.mxu0 0.0
        %1883 = vmatprep.subr.mxu0 0.0
        %1884 = vmatpush2.msra.mxu0 0.0
        %1885 = vmatprep.subr.mxu0 0.0
        %1886 = vmatpush2.msra.mxu0 0.0
        %1887 = vmatprep.subr.mxu0 0.0
        %1888 = vmatpush2.msra.mxu0 0.0
        %1889 = vmatprep.subr.mxu0 0.0
        %1890 = vmatpush2.msra.mxu0 0.0
        %1891 = vmatprep.subr.mxu0 0.0
        %1892 = vmatpush2.msra.mxu0 0.0
        %1893 = vmatprep.subr.mxu0 0.0
        %1894 = vmatpush2.msra.mxu0 0.0
        %1895 = vmatprep.subr.mxu0 0.0
        %1896 = vmatpush2.msra.mxu0 0.0
        %1897 = vmatprep.subr.mxu0 0.0
        %1898 = vmatpush2.msra.mxu0 0.0
        %1899 = vmatprep.subr.mxu0 0.0
        %1900 = vmatpush2.msra.mxu0 0.0
        %1901 = vmatprep.mubr.f32.mxu0 0.0
        %1902 = vmatmul.mubr.f32.gmra.mxu0 %v1835
        %v1903 = vpop.f32.mrf.mxu0
        %v1904 = vadd.f32 %v1811, %v1903
        %v1905 = vpop.f32.mrf.mxu0
        %1906 = vdwg.mxu0
        %v1907 = vmax.f32 %v1904, 0.0
        %v1908 = vld [vmem:[#allocation14] sm:$0xff]
        %v1909 = vld [vmem:[#allocation14 + $0x8] sm:$0xff]
        %v1910 = vld [vmem:[#allocation14 + $0x10] sm:$0xff]
        %v1911 = vld [vmem:[#allocation14 + $0x18] sm:$0xff]
        %v1912 = vld [vmem:[#allocation15] sm:$0x1]
        %v1914 = vlaneseq
        %v1915 = vshrl.u32 %v1914, 7
        %v1916 = vsub.s32 0, %v1915
        %v1917 = vrot.slane %v1912, %v1916
        %v1920 = vsel %vm859, %v1907, 0
        %1922 = vmatprep.subr.mxu0 0.0
        %1923 = vmatpush1.msra.mxu0 0.0
        %1924 = vmatprep.subr.mxu0 0.0
        %1925 = vmatpush1.msra.mxu0 0.0
        %1926 = vmatprep.subr.mxu0 0.0
        %1927 = vmatpush1.msra.mxu0 0.0
        %1928 = vmatprep.subr.mxu0 0.0
        %1929 = vmatpush1.msra.mxu0 0.0
        %1930 = vmatprep.subr.mxu0 0.0
        %1931 = vmatpush1.msra.mxu0 0.0
        %1932 = vmatprep.subr.mxu0 0.0
        %1933 = vmatpush1.msra.mxu0 0.0
        %1934 = vmatprep.subr.mxu0 0.0
        %1935 = vmatpush1.msra.mxu0 0.0
        %1936 = vmatprep.subr.mxu0 0.0
        %1937 = vmatpush1.msra.mxu0 0.0
        %1938 = vmatprep.subr.mxu0 0.0
        %1939 = vmatpush1.msra.mxu0 0.0
        %1940 = vmatprep.subr.mxu0 0.0
        %1941 = vmatpush1.msra.mxu0 0.0
        %1942 = vmatprep.subr.mxu0 0.0
        %1943 = vmatpush1.msra.mxu0 0.0
        %1944 = vmatprep.subr.mxu0 0.0
        %1945 = vmatpush1.msra.mxu0 0.0
        %1946 = vmatprep.subr.mxu0 0.0
        %1947 = vmatpush1.msra.mxu0 %v1911
        %1948 = vmatprep.subr.mxu0 0.0
        %1949 = vmatpush1.msra.mxu0 %v1910
        %1950 = vmatprep.subr.mxu0 0.0
        %1951 = vmatpush1.msra.mxu0 %v1909
        %1952 = vmatprep.subr.mxu0 0.0
        %1953 = vmatpush1.msra.mxu0 %v1908
        %1954 = vmatprep.subr.mxu0 0.0
        %1955 = vmatpush2.msra.mxu0 0.0
        %1956 = vmatprep.subr.mxu0 0.0
        %1957 = vmatpush2.msra.mxu0 0.0
        %1958 = vmatprep.subr.mxu0 0.0
        %1959 = vmatpush2.msra.mxu0 0.0
        %1960 = vmatprep.subr.mxu0 0.0
        %1961 = vmatpush2.msra.mxu0 0.0
        %1962 = vmatprep.subr.mxu0 0.0
        %1963 = vmatpush2.msra.mxu0 0.0
        %1964 = vmatprep.subr.mxu0 0.0
        %1965 = vmatpush2.msra.mxu0 0.0
        %1966 = vmatprep.subr.mxu0 0.0
        %1967 = vmatpush2.msra.mxu0 0.0
        %1968 = vmatprep.subr.mxu0 0.0
        %1969 = vmatpush2.msra.mxu0 0.0
        %1970 = vmatprep.subr.mxu0 0.0
        %1971 = vmatpush2.msra.mxu0 0.0
        %1972 = vmatprep.subr.mxu0 0.0
        %1973 = vmatpush2.msra.mxu0 0.0
        %1974 = vmatprep.subr.mxu0 0.0
        %1975 = vmatpush2.msra.mxu0 0.0
        %1976 = vmatprep.subr.mxu0 0.0
        %1977 = vmatpush2.msra.mxu0 0.0
        %1978 = vmatprep.subr.mxu0 0.0
        %1979 = vmatpush2.msra.mxu0 0.0
        %1980 = vmatprep.subr.mxu0 0.0
        %1981 = vmatpush2.msra.mxu0 0.0
        %1982 = vmatprep.subr.mxu0 0.0
        %1983 = vmatpush2.msra.mxu0 0.0
        %1984 = vmatprep.subr.mxu0 0.0
        %1985 = vmatpush2.msra.mxu0 0.0
        %1986 = vmatprep.mubr.f32.mxu0 0.0
        %1987 = vmatmul.mubr.f32.gmra.mxu0 %v1920
        %v1988 = vpop.f32.mrf.mxu0
        %v1989 = vadd.f32 %v1917, %v1988
        %v1990 = vpop.f32.mrf.mxu0
        %1991 = vdwg.mxu0
        %v1992 = vmax.f32 %v1989, 0.0
        %v1993 = vld [vmem:[%s17] sm:$0xff]
        %v1994 = vld [vmem:[%s17 + $0x8] sm:$0xff]
        %v1995 = vld [vmem:[%s17 + $0x10] sm:$0xff]
        %v1996 = vld [vmem:[%s17 + $0x18] sm:$0xff]
        %v1997 = vld [vmem:[#allocation17] sm:$0x1]
        %v1999 = vlaneseq
        %v2000 = vshrl.u32 %v1999, 7
        %v2001 = vsub.s32 0, %v2000
        %v2002 = vrot.slane %v1997, %v2001
        %v2005 = vsel %vm859, %v1992, 0
        %2007 = vmatprep.subr.mxu0 0.0
        %2008 = vmatpush1.msra.mxu0 0.0
        %2009 = vmatprep.subr.mxu0 0.0
        %2010 = vmatpush1.msra.mxu0 0.0
        %2011 = vmatprep.subr.mxu0 0.0
        %2012 = vmatpush1.msra.mxu0 0.0
        %2013 = vmatprep.subr.mxu0 0.0
        %2014 = vmatpush1.msra.mxu0 0.0
        %2015 = vmatprep.subr.mxu0 0.0
        %2016 = vmatpush1.msra.mxu0 0.0
        %2017 = vmatprep.subr.mxu0 0.0
        %2018 = vmatpush1.msra.mxu0 0.0
        %2019 = vmatprep.subr.mxu0 0.0
        %2020 = vmatpush1.msra.mxu0 0.0
        %2021 = vmatprep.subr.mxu0 0.0
        %2022 = vmatpush1.msra.mxu0 0.0
        %2023 = vmatprep.subr.mxu0 0.0
        %2024 = vmatpush1.msra.mxu0 0.0
        %2025 = vmatprep.subr.mxu0 0.0
        %2026 = vmatpush1.msra.mxu0 0.0
        %2027 = vmatprep.subr.mxu0 0.0
        %2028 = vmatpush1.msra.mxu0 0.0
        %2029 = vmatprep.subr.mxu0 0.0
        %2030 = vmatpush1.msra.mxu0 0.0
        %2031 = vmatprep.subr.mxu0 0.0
        %2032 = vmatpush1.msra.mxu0 %v1996
        %2033 = vmatprep.subr.mxu0 0.0
        %2034 = vmatpush1.msra.mxu0 %v1995
        %2035 = vmatprep.subr.mxu0 0.0
        %2036 = vmatpush1.msra.mxu0 %v1994
        %2037 = vmatprep.subr.mxu0 0.0
        %2038 = vmatpush1.msra.mxu0 %v1993
        %2039 = vmatprep.subr.mxu0 0.0
        %2040 = vmatpush2.msra.mxu0 0.0
        %2041 = vmatprep.subr.mxu0 0.0
        %2042 = vmatpush2.msra.mxu0 0.0
        %2043 = vmatprep.subr.mxu0 0.0
        %2044 = vmatpush2.msra.mxu0 0.0
        %2045 = vmatprep.subr.mxu0 0.0
        %2046 = vmatpush2.msra.mxu0 0.0
        %2047 = vmatprep.subr.mxu0 0.0
        %2048 = vmatpush2.msra.mxu0 0.0
        %2049 = vmatprep.subr.mxu0 0.0
        %2050 = vmatpush2.msra.mxu0 0.0
        %2051 = vmatprep.subr.mxu0 0.0
        %2052 = vmatpush2.msra.mxu0 0.0
        %2053 = vmatprep.subr.mxu0 0.0
        %2054 = vmatpush2.msra.mxu0 0.0
        %2055 = vmatprep.subr.mxu0 0.0
        %2056 = vmatpush2.msra.mxu0 0.0
        %2057 = vmatprep.subr.mxu0 0.0
        %2058 = vmatpush2.msra.mxu0 0.0
        %2059 = vmatprep.subr.mxu0 0.0
        %2060 = vmatpush2.msra.mxu0 0.0
        %2061 = vmatprep.subr.mxu0 0.0
        %2062 = vmatpush2.msra.mxu0 0.0
        %2063 = vmatprep.subr.mxu0 0.0
        %2064 = vmatpush2.msra.mxu0 0.0
        %2065 = vmatprep.subr.mxu0 0.0
        %2066 = vmatpush2.msra.mxu0 0.0
        %2067 = vmatprep.subr.mxu0 0.0
        %2068 = vmatpush2.msra.mxu0 0.0
        %2069 = vmatprep.subr.mxu0 0.0
        %2070 = vmatpush2.msra.mxu0 0.0
        %2071 = vmatprep.mubr.f32.mxu0 0.0
        %2072 = vmatmul.mubr.f32.gmra.mxu0 %v2005
        %v2073 = vpop.f32.mrf.mxu0
        %v2074 = vadd.f32 %v2002, %v2073
        %v2075 = vpop.f32.mrf.mxu0
        %2076 = vdwg.mxu0
        %v2077 = vmax.f32 %v2074, 0.0
        %v2078 = vld [vmem:[#allocation18] sm:$0xff]
        %v2079 = vld [vmem:[#allocation18 + $0x8] sm:$0xff]
        %v2080 = vld [vmem:[#allocation18 + $0x10] sm:$0xff]
        %v2081 = vld [vmem:[#allocation18 + $0x18] sm:$0xff]
        %v2082 = vld [vmem:[%s20] sm:$0x1]
        %v2084 = vlaneseq
        %v2085 = vshrl.u32 %v2084, 7
        %v2086 = vsub.s32 0, %v2085
        %v2087 = vrot.slane %v2082, %v2086
        %v2090 = vsel %vm859, %v2077, 0
        %2092 = vmatprep.subr.mxu0 0.0
        %2093 = vmatpush1.msra.mxu0 0.0
        %2094 = vmatprep.subr.mxu0 0.0
        %2095 = vmatpush1.msra.mxu0 0.0
        %2096 = vmatprep.subr.mxu0 0.0
        %2097 = vmatpush1.msra.mxu0 0.0
        %2098 = vmatprep.subr.mxu0 0.0
        %2099 = vmatpush1.msra.mxu0 0.0
        %2100 = vmatprep.subr.mxu0 0.0
        %2101 = vmatpush1.msra.mxu0 0.0
        %2102 = vmatprep.subr.mxu0 0.0
        %2103 = vmatpush1.msra.mxu0 0.0
        %2104 = vmatprep.subr.mxu0 0.0
        %2105 = vmatpush1.msra.mxu0 0.0
        %2106 = vmatprep.subr.mxu0 0.0
        %2107 = vmatpush1.msra.mxu0 0.0
        %2108 = vmatprep.subr.mxu0 0.0
        %2109 = vmatpush1.msra.mxu0 0.0
        %2110 = vmatprep.subr.mxu0 0.0
        %2111 = vmatpush1.msra.mxu0 0.0
        %2112 = vmatprep.subr.mxu0 0.0
        %2113 = vmatpush1.msra.mxu0 0.0
        %2114 = vmatprep.subr.mxu0 0.0
        %2115 = vmatpush1.msra.mxu0 0.0
        %2116 = vmatprep.subr.mxu0 0.0
        %2117 = vmatpush1.msra.mxu0 %v2081
        %2118 = vmatprep.subr.mxu0 0.0
        %2119 = vmatpush1.msra.mxu0 %v2080
        %2120 = vmatprep.subr.mxu0 0.0
        %2121 = vmatpush1.msra.mxu0 %v2079
        %2122 = vmatprep.subr.mxu0 0.0
        %2123 = vmatpush1.msra.mxu0 %v2078
        %2124 = vmatprep.subr.mxu0 0.0
        %2125 = vmatpush2.msra.mxu0 0.0
        %2126 = vmatprep.subr.mxu0 0.0
        %2127 = vmatpush2.msra.mxu0 0.0
        %2128 = vmatprep.subr.mxu0 0.0
        %2129 = vmatpush2.msra.mxu0 0.0
        %2130 = vmatprep.subr.mxu0 0.0
        %2131 = vmatpush2.msra.mxu0 0.0
        %2132 = vmatprep.subr.mxu0 0.0
        %2133 = vmatpush2.msra.mxu0 0.0
        %2134 = vmatprep.subr.mxu0 0.0
        %2135 = vmatpush2.msra.mxu0 0.0
        %2136 = vmatprep.subr.mxu0 0.0
        %2137 = vmatpush2.msra.mxu0 0.0
        %2138 = vmatprep.subr.mxu0 0.0
        %2139 = vmatpush2.msra.mxu0 0.0
        %2140 = vmatprep.subr.mxu0 0.0
        %2141 = vmatpush2.msra.mxu0 0.0
        %2142 = vmatprep.subr.mxu0 0.0
        %2143 = vmatpush2.msra.mxu0 0.0
        %2144 = vmatprep.subr.mxu0 0.0
        %2145 = vmatpush2.msra.mxu0 0.0
        %2146 = vmatprep.subr.mxu0 0.0
        %2147 = vmatpush2.msra.mxu0 0.0
        %2148 = vmatprep.subr.mxu0 0.0
        %2149 = vmatpush2.msra.mxu0 0.0
        %2150 = vmatprep.subr.mxu0 0.0
        %2151 = vmatpush2.msra.mxu0 0.0
        %2152 = vmatprep.subr.mxu0 0.0
        %2153 = vmatpush2.msra.mxu0 0.0
        %2154 = vmatprep.subr.mxu0 0.0
        %2155 = vmatpush2.msra.mxu0 0.0
        %2156 = vmatprep.mubr.f32.mxu0 0.0
        %2157 = vmatmul.mubr.f32.gmra.mxu0 %v2090
        %v2158 = vpop.f32.mrf.mxu0
        %v2159 = vadd.f32 %v2087, %v2158
        %v2160 = vpop.f32.mrf.mxu0
        %2161 = vdwg.mxu0
        %v2162 = vmax.f32 %v2159, 0.0
        %v2163 = vld [vmem:[%s21] sm:$0x1]
        %v2164 = vld [vmem:[#allocation2] sm:$0x1]
        %2166 = vset.pattern.permute.xlu0 0
        %2167 = vperm.xlu0 %2166, %v2164
        %v2168 = vpop.permute.xlu0 %2167
        %v2170 = vlaneseq
        %v2171 = vshrl.u32 %v2170, 7
        %v2172 = vsub.s32 0, %v2171
        %v2173 = vrot.slane %v2168, %v2172
        %v2175 = vsel %vm859, %v2163, 0
        %v2178 = vsel %vm859, %v2162, 0
        %2180 = vmatprep.subr.mxu0 0.0
        %2181 = vmatpush1.xpose.msra.mxu0 0.0
        %2182 = vmatprep.subr.mxu0 0.0
        %2183 = vmatpush1.xpose.msra.mxu0 0.0
        %2184 = vmatprep.subr.mxu0 0.0
        %2185 = vmatpush1.xpose.msra.mxu0 0.0
        %2186 = vmatprep.subr.mxu0 0.0
        %2187 = vmatpush1.xpose.msra.mxu0 0.0
        %2188 = vmatprep.subr.mxu0 0.0
        %2189 = vmatpush1.xpose.msra.mxu0 0.0
        %2190 = vmatprep.subr.mxu0 0.0
        %2191 = vmatpush1.xpose.msra.mxu0 0.0
        %2192 = vmatprep.subr.mxu0 0.0
        %2193 = vmatpush1.xpose.msra.mxu0 0.0
        %2194 = vmatprep.subr.mxu0 0.0
        %2195 = vmatpush1.xpose.msra.mxu0 0.0
        %2196 = vmatprep.subr.mxu0 0.0
        %2197 = vmatpush1.xpose.msra.mxu0 0.0
        %2198 = vmatprep.subr.mxu0 0.0
        %2199 = vmatpush1.xpose.msra.mxu0 0.0
        %2200 = vmatprep.subr.mxu0 0.0
        %2201 = vmatpush1.xpose.msra.mxu0 0.0
        %2202 = vmatprep.subr.mxu0 0.0
        %2203 = vmatpush1.xpose.msra.mxu0 0.0
        %2204 = vmatprep.subr.mxu0 0.0
        %2205 = vmatpush1.xpose.msra.mxu0 0.0
        %2206 = vmatprep.subr.mxu0 0.0
        %2207 = vmatpush1.xpose.msra.mxu0 0.0
        %2208 = vmatprep.subr.mxu0 0.0
        %2209 = vmatpush1.xpose.msra.mxu0 0.0
        %2210 = vmatprep.subr.mxu0 0.0
        %2211 = vmatpush1.xpose.msra.mxu0 %v2178
        %2212 = vmatprep.subr.mxu0 0.0
        %2213 = vmatpush2.xpose.msra.mxu0 0.0
        %2214 = vmatprep.subr.mxu0 0.0
        %2215 = vmatpush2.xpose.msra.mxu0 0.0
        %2216 = vmatprep.subr.mxu0 0.0
        %2217 = vmatpush2.xpose.msra.mxu0 0.0
        %2218 = vmatprep.subr.mxu0 0.0
        %2219 = vmatpush2.xpose.msra.mxu0 0.0
        %2220 = vmatprep.subr.mxu0 0.0
        %2221 = vmatpush2.xpose.msra.mxu0 0.0
        %2222 = vmatprep.subr.mxu0 0.0
        %2223 = vmatpush2.xpose.msra.mxu0 0.0
        %2224 = vmatprep.subr.mxu0 0.0
        %2225 = vmatpush2.xpose.msra.mxu0 0.0
        %2226 = vmatprep.subr.mxu0 0.0
        %2227 = vmatpush2.xpose.msra.mxu0 0.0
        %2228 = vmatprep.subr.mxu0 0.0
        %2229 = vmatpush2.xpose.msra.mxu0 0.0
        %2230 = vmatprep.subr.mxu0 0.0
        %2231 = vmatpush2.xpose.msra.mxu0 0.0
        %2232 = vmatprep.subr.mxu0 0.0
        %2233 = vmatpush2.xpose.msra.mxu0 0.0
        %2234 = vmatprep.subr.mxu0 0.0
        %2235 = vmatpush2.xpose.msra.mxu0 0.0
        %2236 = vmatprep.subr.mxu0 0.0
        %2237 = vmatpush2.xpose.msra.mxu0 0.0
        %2238 = vmatprep.subr.mxu0 0.0
        %2239 = vmatpush2.xpose.msra.mxu0 0.0
        %2240 = vmatprep.subr.mxu0 0.0
        %2241 = vmatpush2.xpose.msra.mxu0 0.0
        %2242 = vmatprep.subr.mxu0 0.0
        %2243 = vmatpush2.xpose.msra.mxu0 0.0
        %2244 = vmatprep.mubr.f32.mxu0 0.0
        %2245 = vmatmul.mubr.f32.gmra.mxu0 %v2175
        %v2246 = vpop.f32.mrf.mxu0
        %v2247 = vadd.f32 %v2173, %v2246
        %v2248 = vpop.f32.mrf.mxu0
        %2249 = vdwg.mxu0
        %v2250 = vsub.f32 0.0, %v2247
        %v2251 = vmul.f32 %v2250, 1.442695
        %v2252 = vpow.pop %v2251
        %v2253 = vadd.f32 %v2252, 1.0
        %v2254 = vrcp.pop %v2253
        %vm2255 = vcmask 57344
        %2256 = vst.msk [vmem:[%s834] sm:$0x1] %vm2255, %v2254
        %s2257 = sand.u32 %s541, 1
        %s2258 = scalar_lea.sflag [#allocation5], %s2257
        %s2259 = sand.u32 %s541, 1
        %s2260 = scalar_lea.vmem [#allocation20], %s2259
        // Predicated region
        $region153: #{tpu_custom_call.1} parent=111 // pred_check
          %p2261 = pneg %p551
        $region154: #{tpu_custom_call.1} parent=111 // pred_check_branch
          %2263 = sbr.rel (%p2261) target = $region156
        $region155: #{tpu_custom_call.1} parent=111 // pred_region
          %s2265 = ssub.s32 16, 16
          %2266 = vsyncadd %s2258, %s2265
          %s2267 = smul.addr %s45, 16
          %s2268 = scalar_lea.hbm %s23, %s2267
          %s2270 = sshll.u32 %s2260, 4
          %s2271 = int_to_ptr.vmem [resolvable:$true] %s2270
          %2273 = dma.vmem_to_hbm [thread:$0]  %s2271, 16, %s2268, %s2258
        $region156: #{tpu_custom_call.1} parent=111 // pred_fallthru
          _
      $region112: #{tpu_custom_call.1} parent=5 // pred_fallthru
        _
      %p2274 = scmp.le.s32.totalorder 2, %s40
      // Predicated region
      $region157: #{tpu_custom_call.1} parent=5 // pred_check
        %p2275 = pneg %p2274
      $region158: #{tpu_custom_call.1} parent=5 // pred_check_branch
        %2277 = sbr.rel (%p2275) target = $region160
      $region159: #{tpu_custom_call.1} parent=5 // pred_region
        %s2278 = ssub.s32 %s40, 2
        // Predicated region
        $region161: #{tpu_custom_call.1} parent=159 // pred_check
          %p2279 = pneg %p557
        $region162: #{tpu_custom_call.1} parent=159 // pred_check_branch
          %2281 = sbr.rel (%p2279) target = $region164
        $region163: #{tpu_custom_call.1} parent=159 // pred_region
          %s2282 = sand.u32 %s542, 1
          %s2283 = scalar_lea.sflag [#allocation5], %s2282
          %s2284 = sand.u32 %s542, 1
          %s2285 = scalar_lea.vmem [#allocation20], %s2284
          %2286 = dma.done %s2283, 16
        $region164: #{tpu_custom_call.1} parent=159 // pred_fallthru
          _
      $region160: #{tpu_custom_call.1} parent=5 // pred_fallthru
        _
    $region6: #{tpu_custom_call.1} parent=1 // loop_footer
      %s44 = sadd.s32 1, %s40
    $region7: #{tpu_custom_call.1} parent=1 // loop_footer_branch
      %39 = sbr.rel target = $region3
    $region8: #{tpu_custom_call.1} parent=1 // loop_exit
      _
    %2287 = vsyncpa [#allocation4], 1
    %s2288 = scalar_lea.sflag [#allocation4], 1
    %2289 = vsyncpa %s2288, 1
    %2290 = vsyncpa [#allocation7], 1
    %2291 = vsyncpa [#allocation10], 1
    %2292 = vsyncpa [#allocation13], 1
    %2293 = vsyncpa [#allocation16], 1
    %2294 = vsyncpa [#allocation19], 1
    %2295 = vsyncpa [#allocation5], 1
    %s2296 = scalar_lea.sflag [#allocation5], 1
    %2297 = vsyncpa %s2296, 1

</llo_original>
